<compile_context>
chip_gen: v7x
topology: tpu7x:2x2x1
jax: 0.10.0
libtpu: 0.0.40
codegen_flags: <defaults>
</compile_context>

<pallas_src>
from functools import partial

import jax
import jax.numpy as jnp
from jax import lax
from jax.experimental import pallas as pl
from jax.experimental.pallas import tpu as pltpu


def decoder_kernel(inputs_ref, z_ref, w_hc_ref, b_hc_ref,
                   w_ih_ref, w_hh_ref, b_lstm_ref,
                   w_p_ref, b_p_ref,
                   y_out_ref, h_out_ref, c_out_ref,
                   gx_ref, hall_ref, h_ref, c_ref, *, M):
    f32 = jnp.float32
    bf16 = jnp.bfloat16
    t_idx = pl.program_id(1)
    Tc, Bc, I = inputs_ref.shape
    H = h_out_ref.shape[2]
    P = 6 * M + 3
    P_pad = y_out_ref.shape[2]

    # --- (h0, c0) = split(tanh(fc_hc(z)), H, dim=1), once per batch chunk ---
    @pl.when(t_idx == 0)
    def _():
        hc = jnp.tanh(jnp.dot(z_ref[...], w_hc_ref[...],
                              preferred_element_type=f32) + b_hc_ref[...])
        h_ref[...] = hc[:, :H]
        c_ref[...] = hc[:, H:]

    # --- hoisted input projection for this T-chunk (bf16 MXU, f32 acc) ------
    x2d = inputs_ref[...].reshape(Tc * Bc, I).astype(bf16)
    gx = jnp.dot(x2d, w_ih_ref[...], preferred_element_type=f32) + b_lstm_ref[...]
    gx_ref[...] = gx.reshape(Tc, Bc, 4 * H).astype(bf16)

    # --- recurrence: per-gate W_hh column chunks, sliced nonlinearities -----
    def step(t, carry):
        h, c = carry                                    # f32 (Bc, H)
        h_b = h.astype(bf16)
        gx_t = gx_ref[t].astype(f32)                    # (Bc, 4H) f32
        # [i | f] gates -> sigmoid only on the 2H slice
        if_g = jax.nn.sigmoid(
            jnp.dot(h_b, w_hh_ref[:, 0:2 * H], preferred_element_type=f32)
            + gx_t[:, 0:2 * H])
        # g gate -> tanh only on its H slice
        g_g = jnp.tanh(
            jnp.dot(h_b, w_hh_ref[:, 2 * H:3 * H], preferred_element_type=f32)
            + gx_t[:, 2 * H:3 * H])
        # o gate -> sigmoid only on its H slice
        o_g = jax.nn.sigmoid(
            jnp.dot(h_b, w_hh_ref[:, 3 * H:4 * H], preferred_element_type=f32)
            + gx_t[:, 3 * H:4 * H])
        c_new = if_g[:, H:2 * H] * c + if_g[:, 0:H] * g_g
        h_new = o_g * jnp.tanh(c_new)
        hall_ref[t] = h_new.astype(bf16)
        return (h_new, c_new)

    h_fin, c_fin = lax.fori_loop(0, Tc, step, (h_ref[...], c_ref[...]),
                                 unroll=True)
    h_ref[...] = h_fin                                  # carry to next T-chunk
    c_ref[...] = c_fin
    h_out_ref[0] = h_fin
    c_out_ref[0] = c_fin

    # --- GMM head for this chunk, full-vreg 128-lane epilogue ---------------
    h_all = hall_ref[...].reshape(Tc * Bc, H)
    y = jnp.dot(h_all, w_p_ref[...], preferred_element_type=f32) + b_p_ref[...]

    lane = lax.broadcasted_iota(jnp.int32, y.shape, 1)
    pi_mask = lane < M
    exp_mask = (lane >= 3 * M) & (lane < 5 * M)
    tanh_mask = (lane >= 5 * M) & (lane < 6 * M)
    q_mask = (lane >= 6 * M) & (lane < P)
    pad_mask = lane >= P

    def masked_softmax(v, mask):
        vm = jnp.where(mask, v, -1e30)
        m = jnp.max(vm, axis=-1, keepdims=True)
        e = jnp.where(mask, jnp.exp(v - m), 0.0)
        return e / jnp.sum(e, axis=-1, keepdims=True)

    out = y                                             # mu_x / mu_y lanes stay raw
    out = jnp.where(pi_mask, masked_softmax(y, pi_mask), out)
    out = jnp.where(exp_mask, jnp.exp(y), out)
    out = jnp.where(tanh_mask, jnp.tanh(y), out)
    out = jnp.where(q_mask, masked_softmax(y, q_mask), out)
    out = jnp.where(pad_mask, 0.0, out)
    y_out_ref[...] = out.reshape(Tc, Bc, P_pad)


def _largest_divisor_leq(n, cap):
    for d in range(min(cap, n), 0, -1):
        if n % d == 0:
            return d
    return 1


def decoder_rnn_forward(inputs, z, params, *, M, H, t_chunk=None):
    T, B, I = inputs.shape
    Nz = z.shape[1]
    P = 6 * M + 3
    P_pad = ((P + 127) // 128) * 128          # lane-dense output slab width

    if t_chunk is None:
        t_chunk = _largest_divisor_leq(T, 16)
    assert T % t_chunk == 0, "t_chunk must divide T"
    n_t = T // t_chunk

    # Batch padding + chunking: two b-chunks (v7x megacore) when big enough.
    B_pad = ((max(B, 8) + 7) // 8) * 8
    if B_pad >= 16:
        B_pad = ((B_pad + 15) // 16) * 16
        b_chunk = B_pad // 2
    else:
        b_chunk = B_pad
    n_b = B_pad // b_chunk

    if B_pad != B:
        inputs = jnp.pad(inputs, ((0, 0), (0, B_pad - B), (0, 0)))
        z = jnp.pad(z, ((0, B_pad - B), (0, 0)))

    f32 = jnp.float32
    bf16 = jnp.bfloat16

    # --- parameter glue (plain JAX, layout only) ----------------------------
    w_hc_t = params["w_hc"].T.astype(f32)                       # (Nz, 2H)
    b_hc = params["b_hc"][None, :].astype(f32)                  # (1, 2H)
    w_ih_t = params["w_ih"].T.astype(bf16)                      # (I, 4H) gates i,f,g,o
    w_hh_t = params["w_hh"].T.astype(bf16)                      # (H, 4H)
    b_lstm = (params["b_ih"] + params["b_hh"])[None, :].astype(f32)   # (1, 4H)
    # permute fc_params rows so columns group as [pi|mu_x|mu_y|sx|sy|rho|pen]
    perm = jnp.array([6 * m + k for k in range(6) for m in range(M)]
                     + [6 * M, 6 * M + 1, 6 * M + 2], dtype=jnp.int32)
    w_p_t = jnp.zeros((H, P_pad), f32).at[:, :P].set(
        params["w_p"][perm].T).astype(bf16)                     # (H, 128) bf16, zero-padded
    b_p = jnp.zeros((1, P_pad), f32).at[:, :P].set(params["b_p"][perm][None, :])

    out_shape = (
        jax.ShapeDtypeStruct((T, B_pad, P_pad), f32),           # fused head slab
        jax.ShapeDtypeStruct((1, B_pad, H), f32),               # hidden
        jax.ShapeDtypeStruct((1, B_pad, H), f32),               # cell
    )

    vmem = pl.BlockSpec(memory_space=pltpu.MemorySpace.VMEM)    # whole-array resident
    in_specs = [
        pl.BlockSpec((t_chunk, b_chunk, I), lambda b, t: (t, b, 0)),   # inputs
        pl.BlockSpec((b_chunk, Nz), lambda b, t: (b, 0)),              # z
        vmem, vmem,                                                     # fc_hc
        vmem, vmem, vmem,                                               # LSTM weights/bias
        vmem, vmem,                                                     # fc_params
    ]
    out_specs = (
        pl.BlockSpec((t_chunk, b_chunk, P_pad), lambda b, t: (t, b, 0)),
        pl.BlockSpec((1, b_chunk, H), lambda b, t: (0, b, 0)),
        pl.BlockSpec((1, b_chunk, H), lambda b, t: (0, b, 0)),
    )
    scratch_shapes = [
        pltpu.VMEM((t_chunk, b_chunk, 4 * H), bf16),   # hoisted gates_x (chunk)
        pltpu.VMEM((t_chunk, b_chunk, H), bf16),       # hidden states (chunk)
        pltpu.VMEM((b_chunk, H), f32),                 # carried h
        pltpu.VMEM((b_chunk, H), f32),                 # carried c
    ]

    # Scoped-VMEM budget: resident weights + double-buffered blocks + scratch,
    # 2x headroom, capped below the v7x 64 MiB per-core physical ceiling.
    est = (
        Nz * 2 * H * 4 + 2 * H * 4                       # fc_hc (f32)
        + I * 4 * H * 2 + H * 4 * H * 2 + 4 * H * 4      # LSTM weights (bf16) + bias
        + H * P_pad * 2 + P_pad * 4                      # fc_params (bf16) + bias
        + 2 * t_chunk * b_chunk * I * 4                  # inputs block x2
        + 2 * b_chunk * Nz * 4                           # z block x2
        + 2 * t_chunk * b_chunk * P_pad * 4              # y block x2
        + 4 * b_chunk * H * 4                            # h/c out blocks x2
        + t_chunk * b_chunk * 4 * H * 2                  # gx scratch (bf16)
        + t_chunk * b_chunk * H * 2                      # hall scratch (bf16)
        + 2 * b_chunk * H * 4                            # carried h/c (f32)
    )
    vmem_limit = int(min(max(2 * est, 16 * 1024 * 1024), 48 * 1024 * 1024))

    fn = pl.pallas_call(
        partial(decoder_kernel, M=M),
        out_shape=out_shape,
        grid_spec=pltpu.PrefetchScalarGridSpec(
            num_scalar_prefetch=0,
            grid=(n_b, n_t),
            in_specs=in_specs,
            out_specs=out_specs,
            scratch_shapes=scratch_shapes),
        compiler_params=pltpu.CompilerParams(
            dimension_semantics=("parallel", "arbitrary"),
            vmem_limit_bytes=vmem_limit),
    )
    y, h_fin, c_fin = fn(inputs, z, w_hc_t, b_hc, w_ih_t, w_hh_t,
                         b_lstm, w_p_t, b_p)

    # strip batch padding, split fused slab into the 7 heads (layout only)
    y = y[:, :B, :]
    h_fin = h_fin[:, :B, :]
    c_fin = c_fin[:, :B, :]
    pi      = y[..., 0 * M:1 * M]
    mu_x    = y[..., 1 * M:2 * M]
    mu_y    = y[..., 2 * M:3 * M]
    sigma_x = y[..., 3 * M:4 * M]
    sigma_y = y[..., 4 * M:5 * M]
    rho_xy  = y[..., 5 * M:6 * M]
    q       = y[..., 6 * M:6 * M + 3]
    return (pi, mu_x, mu_y, sigma_x, sigma_y, rho_xy, q, h_fin, c_fin)


if __name__ == "__main__":
    # Small shapes consistent with the module:
    #   T = Nmax + 1 = 8, batch B = 2, Nz = 16, dec_hidden H = 32, mixtures M = 4
    T, B, Nz, H, M = 8, 2, 16, 32, 4
    I = Nz + 5

    key = jax.random.PRNGKey(0)
    ks = jax.random.split(key, 10)
    params = {
        "w_hc": jax.random.normal(ks[0], (2 * H, Nz), jnp.float32) * 0.1,     # fc_hc.weight
        "b_hc": jax.random.normal(ks[1], (2 * H,), jnp.float32) * 0.1,        # fc_hc.bias
        "w_ih": jax.random.normal(ks[2], (4 * H, I), jnp.float32) * 0.1,      # lstm.weight_ih_l0
        "w_hh": jax.random.normal(ks[3], (4 * H, H), jnp.float32) * 0.1,      # lstm.weight_hh_l0
        "b_ih": jax.random.normal(ks[4], (4 * H,), jnp.float32) * 0.1,        # lstm.bias_ih_l0
        "b_hh": jax.random.normal(ks[5], (4 * H,), jnp.float32) * 0.1,        # lstm.bias_hh_l0
        "w_p":  jax.random.normal(ks[6], (6 * M + 3, H), jnp.float32) * 0.1,  # fc_params.weight
        "b_p":  jax.random.normal(ks[7], (6 * M + 3,), jnp.float32) * 0.1,    # fc_params.bias
    }
    inputs = jax.random.normal(ks[8], (T, B, I), jnp.float32)   # (seq, batch, Nz+5)
    z = jax.random.normal(ks[9], (B, Nz), jnp.float32)

    # t_chunk=4 -> 2 T-chunks, exercising the carried (h, c) across grid steps.
    outs = decoder_rnn_forward(inputs, z, params, M=M, H=H, t_chunk=4)
    jax.block_until_ready(outs)
    print("KERNEL_OK")
</pallas_src>

<mosaic_0001>
module attributes {stable_mosaic.version = 11 : i64} {
  func.func @decoder_kernel(%arg0: i32, %arg1: i32, %arg2: memref<4x8x21xf32, #tpu.memory_space<vmem>>, %arg3: memref<8x16xf32, #tpu.memory_space<vmem>>, %arg4: memref<16x64xf32, #tpu.memory_space<vmem>>, %arg5: memref<1x64xf32, #tpu.memory_space<vmem>>, %arg6: memref<21x128xbf16, #tpu.memory_space<vmem>>, %arg7: memref<32x128xbf16, #tpu.memory_space<vmem>>, %arg8: memref<1x128xf32, #tpu.memory_space<vmem>>, %arg9: memref<32x128xbf16, #tpu.memory_space<vmem>>, %arg10: memref<1x128xf32, #tpu.memory_space<vmem>>, %arg11: memref<4x8x128xf32, #tpu.memory_space<vmem>>, %arg12: memref<1x8x32xf32, #tpu.memory_space<vmem>>, %arg13: memref<1x8x32xf32, #tpu.memory_space<vmem>>, %arg14: memref<4x8x128xbf16, #tpu.memory_space<vmem>>, %arg15: memref<4x8x32xbf16, #tpu.memory_space<vmem>>, %arg16: memref<8x32xf32, #tpu.memory_space<vmem>>, %arg17: memref<8x32xf32, #tpu.memory_space<vmem>>) attributes {dimension_semantics = [#tpu.dimension_semantics<parallel>, #tpu.dimension_semantics<arbitrary>], iteration_bounds = array<i64: 1, 2>, scalar_prefetch = 0 : i64, scratch_operands = 4 : i64, tpu.core_type = #tpu.core_type<tc>, window_params = [{transform_indices = @transform_0, window_bounds = array<i64: 4, 8, 21>}, {transform_indices = @transform_1, window_bounds = array<i64: 8, 16>}, {pipeline_mode = #tpu.pipeline_mode<synchronous>, transform_indices = @transform_2, window_bounds = array<i64: 16, 64>}, {pipeline_mode = #tpu.pipeline_mode<synchronous>, transform_indices = @transform_3, window_bounds = array<i64: 1, 64>}, {pipeline_mode = #tpu.pipeline_mode<synchronous>, transform_indices = @transform_4, window_bounds = array<i64: 21, 128>}, {pipeline_mode = #tpu.pipeline_mode<synchronous>, transform_indices = @transform_5, window_bounds = array<i64: 32, 128>}, {pipeline_mode = #tpu.pipeline_mode<synchronous>, transform_indices = @transform_6, window_bounds = array<i64: 1, 128>}, {pipeline_mode = #tpu.pipeline_mode<synchronous>, transform_indices = @transform_7, window_bounds = array<i64: 32, 128>}, {pipeline_mode = #tpu.pipeline_mode<synchronous>, transform_indices = @transform_8, window_bounds = array<i64: 1, 128>}, {transform_indices = @transform_9, window_bounds = array<i64: 4, 8, 128>}, {transform_indices = @transform_10, window_bounds = array<i64: 1, 8, 32>}, {transform_indices = @transform_11, window_bounds = array<i64: 1, 8, 32>}]} {
    %c0_i32 = arith.constant 0 : i32
    %0 = arith.cmpi eq, %arg1, %c0_i32 : i32
    %1 = arith.extui %0 : i1 to i32
    %c0_i32_0 = arith.constant 0 : i32
    %2 = arith.cmpi ne, %1, %c0_i32_0 : i32
    scf.if %2 {
      %c0_107 = arith.constant 0 : index
      %c0_108 = arith.constant 0 : index
      %247 = vector.load %arg3[%c0_107, %c0_108] : memref<8x16xf32, #tpu.memory_space<vmem>>, vector<8x16xf32>
      %c0_109 = arith.constant 0 : index
      %c0_110 = arith.constant 0 : index
      %248 = vector.load %arg4[%c0_109, %c0_110] : memref<16x64xf32, #tpu.memory_space<vmem>>, vector<16x64xf32>
      %cst_111 = arith.constant dense<0.000000e+00> : vector<8x64xf32>
      %249 = tpu.matmul %247, %248, %cst_111 {dimension_numbers = #tpu.dot_dimension_numbers<[1], [0], [0], [1], [0, 0, 1, 1], [], []>} : vector<8x16xf32>, vector<16x64xf32>, vector<8x64xf32> -> vector<8x64xf32>
      %c0_112 = arith.constant 0 : index
      %c0_113 = arith.constant 0 : index
      %250 = vector.load %arg5[%c0_112, %c0_113] : memref<1x64xf32, #tpu.memory_space<vmem>>, vector<1x64xf32>
      %251 = vector.broadcast %250 : vector<1x64xf32> to vector<8x64xf32>
      %252 = arith.addf %249, %251 : vector<8x64xf32>
      %253 = math.tanh %252 : vector<8x64xf32>
      %254 = vector.extract_strided_slice %253 {offsets = [0, 0], sizes = [8, 32], strides = [1, 1]} : vector<8x64xf32> to vector<8x32xf32>
      %c0_114 = arith.constant 0 : index
      %c0_115 = arith.constant 0 : index
      %255 = vector.load %arg16[%c0_114, %c0_115] : memref<8x32xf32, #tpu.memory_space<vmem>>, vector<8x32xf32>
      tpu.vector_store %arg16[%c0_114, %c0_115], %254 {strides = array<i32>} : memref<8x32xf32, #tpu.memory_space<vmem>>, vector<8x32xf32>,
      %256 = vector.extract_strided_slice %253 {offsets = [0, 32], sizes = [8, 32], strides = [1, 1]} : vector<8x64xf32> to vector<8x32xf32>
      %c0_116 = arith.constant 0 : index
      %c0_117 = arith.constant 0 : index
      %257 = vector.load %arg17[%c0_116, %c0_117] : memref<8x32xf32, #tpu.memory_space<vmem>>, vector<8x32xf32>
      tpu.vector_store %arg17[%c0_116, %c0_117], %256 {strides = array<i32>} : memref<8x32xf32, #tpu.memory_space<vmem>>, vector<8x32xf32>,
    } else {
    }
    %c0 = arith.constant 0 : index
    %c0_1 = arith.constant 0 : index
    %c0_2 = arith.constant 0 : index
    %3 = vector.load %arg2[%c0, %c0_1, %c0_2] : memref<4x8x21xf32, #tpu.memory_space<vmem>>, vector<4x8x21xf32>
    %4 = vector.shape_cast %3 : vector<4x8x21xf32> to vector<32x21xf32>
    %5 = arith.truncf %4 : vector<32x21xf32> to vector<32x21xbf16>
    %c0_3 = arith.constant 0 : index
    %c0_4 = arith.constant 0 : index
    %6 = vector.load %arg6[%c0_3, %c0_4] : memref<21x128xbf16, #tpu.memory_space<vmem>>, vector<21x128xbf16>
    %cst = arith.constant dense<0.000000e+00> : vector<32x128xf32>
    %7 = tpu.matmul %5, %6, %cst {dimension_numbers = #tpu.dot_dimension_numbers<[1], [0], [0], [1], [0, 0, 1, 1], [], []>} : vector<32x21xbf16>, vector<21x128xbf16>, vector<32x128xf32> -> vector<32x128xf32>
    %c0_5 = arith.constant 0 : index
    %c0_6 = arith.constant 0 : index
    %8 = vector.load %arg8[%c0_5, %c0_6] : memref<1x128xf32, #tpu.memory_space<vmem>>, vector<1x128xf32>
    %9 = vector.broadcast %8 : vector<1x128xf32> to vector<32x128xf32>
    %10 = arith.addf %7, %9 : vector<32x128xf32>
    %11 = vector.shape_cast %10 : vector<32x128xf32> to vector<4x8x128xf32>
    %12 = arith.truncf %11 : vector<4x8x128xf32> to vector<4x8x128xbf16>
    %c0_7 = arith.constant 0 : index
    %c0_8 = arith.constant 0 : index
    %c0_9 = arith.constant 0 : index
    %13 = vector.load %arg14[%c0_7, %c0_8, %c0_9] : memref<4x8x128xbf16, #tpu.memory_space<vmem>>, vector<4x8x128xbf16>
    tpu.vector_store %arg14[%c0_7, %c0_8, %c0_9], %12 {strides = array<i32>} : memref<4x8x128xbf16, #tpu.memory_space<vmem>>, vector<4x8x128xbf16>,
    %c0_10 = arith.constant 0 : index
    %c0_11 = arith.constant 0 : index
    %14 = vector.load %arg16[%c0_10, %c0_11] : memref<8x32xf32, #tpu.memory_space<vmem>>, vector<8x32xf32>
    %c0_12 = arith.constant 0 : index
    %c0_13 = arith.constant 0 : index
    %15 = vector.load %arg17[%c0_12, %c0_13] : memref<8x32xf32, #tpu.memory_space<vmem>>, vector<8x32xf32>
    %c0_i32_14 = arith.constant 0 : i32
    %16 = arith.truncf %14 : vector<8x32xf32> to vector<8x32xbf16>
    %17 = arith.index_cast %c0_i32_14 : i32 to index
    %c0_15 = arith.constant 0 : index
    %c0_16 = arith.constant 0 : index
    %18 = vector.load %arg14[%17, %c0_15, %c0_16] : memref<4x8x128xbf16, #tpu.memory_space<vmem>>, vector<1x8x128xbf16>
    %19 = vector.shape_cast %18 : vector<1x8x128xbf16> to vector<8x128xbf16>
    %20 = arith.extf %19 : vector<8x128xbf16> to vector<8x128xf32>
    %c0_17 = arith.constant 0 : index
    %c0_18 = arith.constant 0 : index
    %21 = vector.load %arg7[%c0_17, %c0_18] : memref<32x128xbf16, #tpu.memory_space<vmem>>, vector<32x64xbf16>
    %cst_19 = arith.constant dense<0.000000e+00> : vector<8x64xf32>
    %22 = tpu.matmul %16, %21, %cst_19 {dimension_numbers = #tpu.dot_dimension_numbers<[1], [0], [0], [1], [0, 0, 1, 1], [], []>} : vector<8x32xbf16>, vector<32x64xbf16>, vector<8x64xf32> -> vector<8x64xf32>
    %23 = vector.extract_strided_slice %20 {offsets = [0, 0], sizes = [8, 64], strides = [1, 1]} : vector<8x128xf32> to vector<8x64xf32>
    %24 = arith.addf %22, %23 : vector<8x64xf32>
    %25 = arith.negf %24 : vector<8x64xf32>
    %26 = math.exp %25 : vector<8x64xf32>
    %cst_20 = arith.constant 1.000000e+00 : f32
    %27 = vector.broadcast %cst_20 : f32 to vector<8x64xf32>
    %28 = arith.addf %27, %26 : vector<8x64xf32>
    %29 = arith.divf %27, %28 : vector<8x64xf32>
    %c0_21 = arith.constant 0 : index
    %c64 = arith.constant 64 : index
    %30 = vector.load %arg7[%c0_21, %c64] : memref<32x128xbf16, #tpu.memory_space<vmem>>, vector<32x32xbf16>
    %cst_22 = arith.constant dense<0.000000e+00> : vector<8x32xf32>
    %31 = tpu.matmul %16, %30, %cst_22 {dimension_numbers = #tpu.dot_dimension_numbers<[1], [0], [0], [1], [0, 0, 1, 1], [], []>} : vector<8x32xbf16>, vector<32x32xbf16>, vector<8x32xf32> -> vector<8x32xf32>
    %32 = vector.extract_strided_slice %20 {offsets = [0, 64], sizes = [8, 32], strides = [1, 1]} : vector<8x128xf32> to vector<8x32xf32>
    %33 = arith.addf %31, %32 : vector<8x32xf32>
    %34 = math.tanh %33 : vector<8x32xf32>
    %c0_23 = arith.constant 0 : index
    %c96 = arith.constant 96 : index
    %35 = vector.load %arg7[%c0_23, %c96] : memref<32x128xbf16, #tpu.memory_space<vmem>>, vector<32x32xbf16>
    %cst_24 = arith.constant dense<0.000000e+00> : vector<8x32xf32>
    %36 = tpu.matmul %16, %35, %cst_24 {dimension_numbers = #tpu.dot_dimension_numbers<[1], [0], [0], [1], [0, 0, 1, 1], [], []>} : vector<8x32xbf16>, vector<32x32xbf16>, vector<8x32xf32> -> vector<8x32xf32>
    %37 = vector.extract_strided_slice %20 {offsets = [0, 96], sizes = [8, 32], strides = [1, 1]} : vector<8x128xf32> to vector<8x32xf32>
    %38 = arith.addf %36, %37 : vector<8x32xf32>
    %39 = arith.negf %38 : vector<8x32xf32>
    %40 = math.exp %39 : vector<8x32xf32>
    %cst_25 = arith.constant 1.000000e+00 : f32
    %41 = vector.broadcast %cst_25 : f32 to vector<8x32xf32>
    %42 = arith.addf %41, %40 : vector<8x32xf32>
    %43 = arith.divf %41, %42 : vector<8x32xf32>
    %44 = vector.extract_strided_slice %29 {offsets = [0, 32], sizes = [8, 32], strides = [1, 1]} : vector<8x64xf32> to vector<8x32xf32>
    %45 = arith.mulf %44, %15 : vector<8x32xf32>
    %46 = vector.extract_strided_slice %29 {offsets = [0, 0], sizes = [8, 32], strides = [1, 1]} : vector<8x64xf32> to vector<8x32xf32>
    %47 = arith.mulf %46, %34 : vector<8x32xf32>
    %48 = arith.addf %45, %47 : vector<8x32xf32>
    %49 = math.tanh %48 : vector<8x32xf32>
    %50 = arith.mulf %43, %49 : vector<8x32xf32>
    %51 = arith.truncf %50 : vector<8x32xf32> to vector<8x32xbf16>
    %52 = arith.index_cast %c0_i32_14 : i32 to index
    %c0_26 = arith.constant 0 : index
    %c0_27 = arith.constant 0 : index
    %53 = vector.load %arg15[%52, %c0_26, %c0_27] : memref<4x8x32xbf16, #tpu.memory_space<vmem>>, vector<1x8x32xbf16>
    %54 = vector.shape_cast %53 : vector<1x8x32xbf16> to vector<8x32xbf16>
    %55 = vector.shape_cast %51 : vector<8x32xbf16> to vector<1x8x32xbf16>
    tpu.vector_store %arg15[%52, %c0_26, %c0_27], %55 {strides = array<i32>} : memref<4x8x32xbf16, #tpu.memory_space<vmem>>, vector<1x8x32xbf16>,
    %c1_i32 = arith.constant 1 : i32
    %56 = arith.truncf %50 : vector<8x32xf32> to vector<8x32xbf16>
    %57 = arith.index_cast %c1_i32 : i32 to index
    %c0_28 = arith.constant 0 : index
    %c0_29 = arith.constant 0 : index
    %58 = vector.load %arg14[%57, %c0_28, %c0_29] : memref<4x8x128xbf16, #tpu.memory_space<vmem>>, vector<1x8x128xbf16>
    %59 = vector.shape_cast %58 : vector<1x8x128xbf16> to vector<8x128xbf16>
    %60 = arith.extf %59 : vector<8x128xbf16> to vector<8x128xf32>
    %c0_30 = arith.constant 0 : index
    %c0_31 = arith.constant 0 : index
    %61 = vector.load %arg7[%c0_30, %c0_31] : memref<32x128xbf16, #tpu.memory_space<vmem>>, vector<32x64xbf16>
    %cst_32 = arith.constant dense<0.000000e+00> : vector<8x64xf32>
    %62 = tpu.matmul %56, %61, %cst_32 {dimension_numbers = #tpu.dot_dimension_numbers<[1], [0], [0], [1], [0, 0, 1, 1], [], []>} : vector<8x32xbf16>, vector<32x64xbf16>, vector<8x64xf32> -> vector<8x64xf32>
    %63 = vector.extract_strided_slice %60 {offsets = [0, 0], sizes = [8, 64], strides = [1, 1]} : vector<8x128xf32> to vector<8x64xf32>
    %64 = arith.addf %62, %63 : vector<8x64xf32>
    %65 = arith.negf %64 : vector<8x64xf32>
    %66 = math.exp %65 : vector<8x64xf32>
    %cst_33 = arith.constant 1.000000e+00 : f32
    %67 = vector.broadcast %cst_33 : f32 to vector<8x64xf32>
    %68 = arith.addf %67, %66 : vector<8x64xf32>
    %69 = arith.divf %67, %68 : vector<8x64xf32>
    %c0_34 = arith.constant 0 : index
    %c64_35 = arith.constant 64 : index
    %70 = vector.load %arg7[%c0_34, %c64_35] : memref<32x128xbf16, #tpu.memory_space<vmem>>, vector<32x32xbf16>
    %cst_36 = arith.constant dense<0.000000e+00> : vector<8x32xf32>
    %71 = tpu.matmul %56, %70, %cst_36 {dimension_numbers = #tpu.dot_dimension_numbers<[1], [0], [0], [1], [0, 0, 1, 1], [], []>} : vector<8x32xbf16>, vector<32x32xbf16>, vector<8x32xf32> -> vector<8x32xf32>
    %72 = vector.extract_strided_slice %60 {offsets = [0, 64], sizes = [8, 32], strides = [1, 1]} : vector<8x128xf32> to vector<8x32xf32>
    %73 = arith.addf %71, %72 : vector<8x32xf32>
    %74 = math.tanh %73 : vector<8x32xf32>
    %c0_37 = arith.constant 0 : index
    %c96_38 = arith.constant 96 : index
    %75 = vector.load %arg7[%c0_37, %c96_38] : memref<32x128xbf16, #tpu.memory_space<vmem>>, vector<32x32xbf16>
    %cst_39 = arith.constant dense<0.000000e+00> : vector<8x32xf32>
    %76 = tpu.matmul %56, %75, %cst_39 {dimension_numbers = #tpu.dot_dimension_numbers<[1], [0], [0], [1], [0, 0, 1, 1], [], []>} : vector<8x32xbf16>, vector<32x32xbf16>, vector<8x32xf32> -> vector<8x32xf32>
    %77 = vector.extract_strided_slice %60 {offsets = [0, 96], sizes = [8, 32], strides = [1, 1]} : vector<8x128xf32> to vector<8x32xf32>
    %78 = arith.addf %76, %77 : vector<8x32xf32>
    %79 = arith.negf %78 : vector<8x32xf32>
    %80 = math.exp %79 : vector<8x32xf32>
    %cst_40 = arith.constant 1.000000e+00 : f32
    %81 = vector.broadcast %cst_40 : f32 to vector<8x32xf32>
    %82 = arith.addf %81, %80 : vector<8x32xf32>
    %83 = arith.divf %81, %82 : vector<8x32xf32>
    %84 = vector.extract_strided_slice %69 {offsets = [0, 32], sizes = [8, 32], strides = [1, 1]} : vector<8x64xf32> to vector<8x32xf32>
    %85 = arith.mulf %84, %48 : vector<8x32xf32>
    %86 = vector.extract_strided_slice %69 {offsets = [0, 0], sizes = [8, 32], strides = [1, 1]} : vector<8x64xf32> to vector<8x32xf32>
    %87 = arith.mulf %86, %74 : vector<8x32xf32>
    %88 = arith.addf %85, %87 : vector<8x32xf32>
    %89 = math.tanh %88 : vector<8x32xf32>
    %90 = arith.mulf %83, %89 : vector<8x32xf32>
    %91 = arith.truncf %90 : vector<8x32xf32> to vector<8x32xbf16>
    %92 = arith.index_cast %c1_i32 : i32 to index
    %c0_41 = arith.constant 0 : index
    %c0_42 = arith.constant 0 : index
    %93 = vector.load %arg15[%92, %c0_41, %c0_42] : memref<4x8x32xbf16, #tpu.memory_space<vmem>>, vector<1x8x32xbf16>
    %94 = vector.shape_cast %93 : vector<1x8x32xbf16> to vector<8x32xbf16>
    %95 = vector.shape_cast %91 : vector<8x32xbf16> to vector<1x8x32xbf16>
    tpu.vector_store %arg15[%92, %c0_41, %c0_42], %95 {strides = array<i32>} : memref<4x8x32xbf16, #tpu.memory_space<vmem>>, vector<1x8x32xbf16>,
    %c2_i32 = arith.constant 2 : i32
    %96 = arith.truncf %90 : vector<8x32xf32> to vector<8x32xbf16>
    %97 = arith.index_cast %c2_i32 : i32 to index
    %c0_43 = arith.constant 0 : index
    %c0_44 = arith.constant 0 : index
    %98 = vector.load %arg14[%97, %c0_43, %c0_44] : memref<4x8x128xbf16, #tpu.memory_space<vmem>>, vector<1x8x128xbf16>
    %99 = vector.shape_cast %98 : vector<1x8x128xbf16> to vector<8x128xbf16>
    %100 = arith.extf %99 : vector<8x128xbf16> to vector<8x128xf32>
    %c0_45 = arith.constant 0 : index
    %c0_46 = arith.constant 0 : index
    %101 = vector.load %arg7[%c0_45, %c0_46] : memref<32x128xbf16, #tpu.memory_space<vmem>>, vector<32x64xbf16>
    %cst_47 = arith.constant dense<0.000000e+00> : vector<8x64xf32>
    %102 = tpu.matmul %96, %101, %cst_47 {dimension_numbers = #tpu.dot_dimension_numbers<[1], [0], [0], [1], [0, 0, 1, 1], [], []>} : vector<8x32xbf16>, vector<32x64xbf16>, vector<8x64xf32> -> vector<8x64xf32>
    %103 = vector.extract_strided_slice %100 {offsets = [0, 0], sizes = [8, 64], strides = [1, 1]} : vector<8x128xf32> to vector<8x64xf32>
    %104 = arith.addf %102, %103 : vector<8x64xf32>
    %105 = arith.negf %104 : vector<8x64xf32>
    %106 = math.exp %105 : vector<8x64xf32>
    %cst_48 = arith.constant 1.000000e+00 : f32
    %107 = vector.broadcast %cst_48 : f32 to vector<8x64xf32>
    %108 = arith.addf %107, %106 : vector<8x64xf32>
    %109 = arith.divf %107, %108 : vector<8x64xf32>
    %c0_49 = arith.constant 0 : index
    %c64_50 = arith.constant 64 : index
    %110 = vector.load %arg7[%c0_49, %c64_50] : memref<32x128xbf16, #tpu.memory_space<vmem>>, vector<32x32xbf16>
    %cst_51 = arith.constant dense<0.000000e+00> : vector<8x32xf32>
    %111 = tpu.matmul %96, %110, %cst_51 {dimension_numbers = #tpu.dot_dimension_numbers<[1], [0], [0], [1], [0, 0, 1, 1], [], []>} : vector<8x32xbf16>, vector<32x32xbf16>, vector<8x32xf32> -> vector<8x32xf32>
    %112 = vector.extract_strided_slice %100 {offsets = [0, 64], sizes = [8, 32], strides = [1, 1]} : vector<8x128xf32> to vector<8x32xf32>
    %113 = arith.addf %111, %112 : vector<8x32xf32>
    %114 = math.tanh %113 : vector<8x32xf32>
    %c0_52 = arith.constant 0 : index
    %c96_53 = arith.constant 96 : index
    %115 = vector.load %arg7[%c0_52, %c96_53] : memref<32x128xbf16, #tpu.memory_space<vmem>>, vector<32x32xbf16>
    %cst_54 = arith.constant dense<0.000000e+00> : vector<8x32xf32>
    %116 = tpu.matmul %96, %115, %cst_54 {dimension_numbers = #tpu.dot_dimension_numbers<[1], [0], [0], [1], [0, 0, 1, 1], [], []>} : vector<8x32xbf16>, vector<32x32xbf16>, vector<8x32xf32> -> vector<8x32xf32>
    %117 = vector.extract_strided_slice %100 {offsets = [0, 96], sizes = [8, 32], strides = [1, 1]} : vector<8x128xf32> to vector<8x32xf32>
    %118 = arith.addf %116, %117 : vector<8x32xf32>
    %119 = arith.negf %118 : vector<8x32xf32>
    %120 = math.exp %119 : vector<8x32xf32>
    %cst_55 = arith.constant 1.000000e+00 : f32
    %121 = vector.broadcast %cst_55 : f32 to vector<8x32xf32>
    %122 = arith.addf %121, %120 : vector<8x32xf32>
    %123 = arith.divf %121, %122 : vector<8x32xf32>
    %124 = vector.extract_strided_slice %109 {offsets = [0, 32], sizes = [8, 32], strides = [1, 1]} : vector<8x64xf32> to vector<8x32xf32>
    %125 = arith.mulf %124, %88 : vector<8x32xf32>
    %126 = vector.extract_strided_slice %109 {offsets = [0, 0], sizes = [8, 32], strides = [1, 1]} : vector<8x64xf32> to vector<8x32xf32>
    %127 = arith.mulf %126, %114 : vector<8x32xf32>
    %128 = arith.addf %125, %127 : vector<8x32xf32>
    %129 = math.tanh %128 : vector<8x32xf32>
    %130 = arith.mulf %123, %129 : vector<8x32xf32>
    %131 = arith.truncf %130 : vector<8x32xf32> to vector<8x32xbf16>
    %132 = arith.index_cast %c2_i32 : i32 to index
    %c0_56 = arith.constant 0 : index
    %c0_57 = arith.constant 0 : index
    %133 = vector.load %arg15[%132, %c0_56, %c0_57] : memref<4x8x32xbf16, #tpu.memory_space<vmem>>, vector<1x8x32xbf16>
    %134 = vector.shape_cast %133 : vector<1x8x32xbf16> to vector<8x32xbf16>
    %135 = vector.shape_cast %131 : vector<8x32xbf16> to vector<1x8x32xbf16>
    tpu.vector_store %arg15[%132, %c0_56, %c0_57], %135 {strides = array<i32>} : memref<4x8x32xbf16, #tpu.memory_space<vmem>>, vector<1x8x32xbf16>,
    %c3_i32 = arith.constant 3 : i32
    %136 = arith.truncf %130 : vector<8x32xf32> to vector<8x32xbf16>
    %137 = arith.index_cast %c3_i32 : i32 to index
    %c0_58 = arith.constant 0 : index
    %c0_59 = arith.constant 0 : index
    %138 = vector.load %arg14[%137, %c0_58, %c0_59] : memref<4x8x128xbf16, #tpu.memory_space<vmem>>, vector<1x8x128xbf16>
    %139 = vector.shape_cast %138 : vector<1x8x128xbf16> to vector<8x128xbf16>
    %140 = arith.extf %139 : vector<8x128xbf16> to vector<8x128xf32>
    %c0_60 = arith.constant 0 : index
    %c0_61 = arith.constant 0 : index
    %141 = vector.load %arg7[%c0_60, %c0_61] : memref<32x128xbf16, #tpu.memory_space<vmem>>, vector<32x64xbf16>
    %cst_62 = arith.constant dense<0.000000e+00> : vector<8x64xf32>
    %142 = tpu.matmul %136, %141, %cst_62 {dimension_numbers = #tpu.dot_dimension_numbers<[1], [0], [0], [1], [0, 0, 1, 1], [], []>} : vector<8x32xbf16>, vector<32x64xbf16>, vector<8x64xf32> -> vector<8x64xf32>
    %143 = vector.extract_strided_slice %140 {offsets = [0, 0], sizes = [8, 64], strides = [1, 1]} : vector<8x128xf32> to vector<8x64xf32>
    %144 = arith.addf %142, %143 : vector<8x64xf32>
    %145 = arith.negf %144 : vector<8x64xf32>
    %146 = math.exp %145 : vector<8x64xf32>
    %cst_63 = arith.constant 1.000000e+00 : f32
    %147 = vector.broadcast %cst_63 : f32 to vector<8x64xf32>
    %148 = arith.addf %147, %146 : vector<8x64xf32>
    %149 = arith.divf %147, %148 : vector<8x64xf32>
    %c0_64 = arith.constant 0 : index
    %c64_65 = arith.constant 64 : index
    %150 = vector.load %arg7[%c0_64, %c64_65] : memref<32x128xbf16, #tpu.memory_space<vmem>>, vector<32x32xbf16>
    %cst_66 = arith.constant dense<0.000000e+00> : vector<8x32xf32>
    %151 = tpu.matmul %136, %150, %cst_66 {dimension_numbers = #tpu.dot_dimension_numbers<[1], [0], [0], [1], [0, 0, 1, 1], [], []>} : vector<8x32xbf16>, vector<32x32xbf16>, vector<8x32xf32> -> vector<8x32xf32>
    %152 = vector.extract_strided_slice %140 {offsets = [0, 64], sizes = [8, 32], strides = [1, 1]} : vector<8x128xf32> to vector<8x32xf32>
    %153 = arith.addf %151, %152 : vector<8x32xf32>
    %154 = math.tanh %153 : vector<8x32xf32>
    %c0_67 = arith.constant 0 : index
    %c96_68 = arith.constant 96 : index
    %155 = vector.load %arg7[%c0_67, %c96_68] : memref<32x128xbf16, #tpu.memory_space<vmem>>, vector<32x32xbf16>
    %cst_69 = arith.constant dense<0.000000e+00> : vector<8x32xf32>
    %156 = tpu.matmul %136, %155, %cst_69 {dimension_numbers = #tpu.dot_dimension_numbers<[1], [0], [0], [1], [0, 0, 1, 1], [], []>} : vector<8x32xbf16>, vector<32x32xbf16>, vector<8x32xf32> -> vector<8x32xf32>
    %157 = vector.extract_strided_slice %140 {offsets = [0, 96], sizes = [8, 32], strides = [1, 1]} : vector<8x128xf32> to vector<8x32xf32>
    %158 = arith.addf %156, %157 : vector<8x32xf32>
    %159 = arith.negf %158 : vector<8x32xf32>
    %160 = math.exp %159 : vector<8x32xf32>
    %cst_70 = arith.constant 1.000000e+00 : f32
    %161 = vector.broadcast %cst_70 : f32 to vector<8x32xf32>
    %162 = arith.addf %161, %160 : vector<8x32xf32>
    %163 = arith.divf %161, %162 : vector<8x32xf32>
    %164 = vector.extract_strided_slice %149 {offsets = [0, 32], sizes = [8, 32], strides = [1, 1]} : vector<8x64xf32> to vector<8x32xf32>
    %165 = arith.mulf %164, %128 : vector<8x32xf32>
    %166 = vector.extract_strided_slice %149 {offsets = [0, 0], sizes = [8, 32], strides = [1, 1]} : vector<8x64xf32> to vector<8x32xf32>
    %167 = arith.mulf %166, %154 : vector<8x32xf32>
    %168 = arith.addf %165, %167 : vector<8x32xf32>
    %169 = math.tanh %168 : vector<8x32xf32>
    %170 = arith.mulf %163, %169 : vector<8x32xf32>
    %171 = arith.truncf %170 : vector<8x32xf32> to vector<8x32xbf16>
    %172 = arith.index_cast %c3_i32 : i32 to index
    %c0_71 = arith.constant 0 : index
    %c0_72 = arith.constant 0 : index
    %173 = vector.load %arg15[%172, %c0_71, %c0_72] : memref<4x8x32xbf16, #tpu.memory_space<vmem>>, vector<1x8x32xbf16>
    %174 = vector.shape_cast %173 : vector<1x8x32xbf16> to vector<8x32xbf16>
    %175 = vector.shape_cast %171 : vector<8x32xbf16> to vector<1x8x32xbf16>
    tpu.vector_store %arg15[%172, %c0_71, %c0_72], %175 {strides = array<i32>} : memref<4x8x32xbf16, #tpu.memory_space<vmem>>, vector<1x8x32xbf16>,
    %c4_i32 = arith.constant 4 : i32
    %c0_73 = arith.constant 0 : index
    %c0_74 = arith.constant 0 : index
    %176 = vector.load %arg16[%c0_73, %c0_74] : memref<8x32xf32, #tpu.memory_space<vmem>>, vector<8x32xf32>
    tpu.vector_store %arg16[%c0_73, %c0_74], %170 {strides = array<i32>} : memref<8x32xf32, #tpu.memory_space<vmem>>, vector<8x32xf32>,
    %c0_75 = arith.constant 0 : index
    %c0_76 = arith.constant 0 : index
    %177 = vector.load %arg17[%c0_75, %c0_76] : memref<8x32xf32, #tpu.memory_space<vmem>>, vector<8x32xf32>
    tpu.vector_store %arg17[%c0_75, %c0_76], %168 {strides = array<i32>} : memref<8x32xf32, #tpu.memory_space<vmem>>, vector<8x32xf32>,
    %c0_77 = arith.constant 0 : index
    %c0_78 = arith.constant 0 : index
    %c0_79 = arith.constant 0 : index
    %178 = vector.load %arg12[%c0_77, %c0_78, %c0_79] : memref<1x8x32xf32, #tpu.memory_space<vmem>>, vector<1x8x32xf32>
    %179 = vector.shape_cast %178 : vector<1x8x32xf32> to vector<8x32xf32>
    %180 = vector.shape_cast %170 : vector<8x32xf32> to vector<1x8x32xf32>
    tpu.vector_store %arg12[%c0_77, %c0_78, %c0_79], %180 {strides = array<i32>} : memref<1x8x32xf32, #tpu.memory_space<vmem>>, vector<1x8x32xf32>,
    %c0_80 = arith.constant 0 : index
    %c0_81 = arith.constant 0 : index
    %c0_82 = arith.constant 0 : index
    %181 = vector.load %arg13[%c0_80, %c0_81, %c0_82] : memref<1x8x32xf32, #tpu.memory_space<vmem>>, vector<1x8x32xf32>
    %182 = vector.shape_cast %181 : vector<1x8x32xf32> to vector<8x32xf32>
    %183 = vector.shape_cast %168 : vector<8x32xf32> to vector<1x8x32xf32>
    tpu.vector_store %arg13[%c0_80, %c0_81, %c0_82], %183 {strides = array<i32>} : memref<1x8x32xf32, #tpu.memory_space<vmem>>, vector<1x8x32xf32>,
    %c0_83 = arith.constant 0 : index
    %c0_84 = arith.constant 0 : index
    %c0_85 = arith.constant 0 : index
    %184 = vector.load %arg15[%c0_83, %c0_84, %c0_85] : memref<4x8x32xbf16, #tpu.memory_space<vmem>>, vector<4x8x32xbf16>
    %185 = vector.shape_cast %184 : vector<4x8x32xbf16> to vector<32x32xbf16>
    %c0_86 = arith.constant 0 : index
    %c0_87 = arith.constant 0 : index
    %186 = vector.load %arg9[%c0_86, %c0_87] : memref<32x128xbf16, #tpu.memory_space<vmem>>, vector<32x128xbf16>
    %cst_88 = arith.constant dense<0.000000e+00> : vector<32x128xf32>
    %187 = tpu.matmul %185, %186, %cst_88 {dimension_numbers = #tpu.dot_dimension_numbers<[1], [0], [0], [1], [0, 0, 1, 1], [], []>} : vector<32x32xbf16>, vector<32x128xbf16>, vector<32x128xf32> -> vector<32x128xf32>
    %c0_89 = arith.constant 0 : index
    %c0_90 = arith.constant 0 : index
    %188 = vector.load %arg10[%c0_89, %c0_90] : memref<1x128xf32, #tpu.memory_space<vmem>>, vector<1x128xf32>
    %189 = vector.broadcast %188 : vector<1x128xf32> to vector<32x128xf32>
    %190 = arith.addf %187, %189 : vector<32x128xf32>
    %191 = tpu.iota {dimensions = array<i32: 1>} : vector<32x128xi32>
    %c4_i32_91 = arith.constant 4 : i32
    %192 = vector.broadcast %c4_i32_91 : i32 to vector<32x128xi32>
    %193 = arith.cmpi slt, %191, %192 : vector<32x128xi32>
    %c12_i32 = arith.constant 12 : i32
    %194 = vector.broadcast %c12_i32 : i32 to vector<32x128xi32>
    %195 = arith.cmpi sge, %191, %194 : vector<32x128xi32>
    %c20_i32 = arith.constant 20 : i32
    %196 = vector.broadcast %c20_i32 : i32 to vector<32x128xi32>
    %197 = arith.cmpi slt, %191, %196 : vector<32x128xi32>
    %198 = arith.andi %195, %197 : vector<32x128xi1>
    %c20_i32_92 = arith.constant 20 : i32
    %199 = vector.broadcast %c20_i32_92 : i32 to vector<32x128xi32>
    %200 = arith.cmpi sge, %191, %199 : vector<32x128xi32>
    %c24_i32 = arith.constant 24 : i32
    %201 = vector.broadcast %c24_i32 : i32 to vector<32x128xi32>
    %202 = arith.cmpi slt, %191, %201 : vector<32x128xi32>
    %203 = arith.andi %200, %202 : vector<32x128xi1>
    %c24_i32_93 = arith.constant 24 : i32
    %204 = vector.broadcast %c24_i32_93 : i32 to vector<32x128xi32>
    %205 = arith.cmpi sge, %191, %204 : vector<32x128xi32>
    %c27_i32 = arith.constant 27 : i32
    %206 = vector.broadcast %c27_i32 : i32 to vector<32x128xi32>
    %207 = arith.cmpi slt, %191, %206 : vector<32x128xi32>
    %208 = arith.andi %205, %207 : vector<32x128xi1>
    %c27_i32_94 = arith.constant 27 : i32
    %209 = vector.broadcast %c27_i32_94 : i32 to vector<32x128xi32>
    %210 = arith.cmpi sge, %191, %209 : vector<32x128xi32>
    %cst_95 = arith.constant -1.000000e+30 : f32
    %211 = vector.broadcast %cst_95 : f32 to vector<32x128xf32>
    %212 = arith.select %193, %190, %211 : vector<32x128xi1>, vector<32x128xf32>
    %cst_96 = arith.constant dense<0xFF800000> : vector<32xf32>
    %213 = vector.multi_reduction <maximumf>, %212, %cst_96 [1] : vector<32x128xf32> to vector<32xf32>
    %214 = vector.shape_cast %213 : vector<32xf32> to vector<32x1xf32>
    %215 = vector.broadcast %214 : vector<32x1xf32> to vector<32x128xf32>
    %216 = arith.subf %190, %215 : vector<32x128xf32>
    %217 = math.exp %216 : vector<32x128xf32>
    %cst_97 = arith.constant 0.000000e+00 : f32
    %218 = vector.broadcast %cst_97 : f32 to vector<32x128xf32>
    %219 = arith.select %193, %217, %218 : vector<32x128xi1>, vector<32x128xf32>
    %cst_98 = arith.constant dense<0.000000e+00> : vector<32xf32>
    %220 = vector.multi_reduction <add>, %219, %cst_98 [1] : vector<32x128xf32> to vector<32xf32>
    %221 = vector.shape_cast %220 : vector<32xf32> to vector<32x1xf32>
    %222 = vector.broadcast %221 : vector<32x1xf32> to vector<32x128xf32>
    %223 = arith.divf %219, %222 : vector<32x128xf32>
    %224 = arith.select %193, %223, %190 : vector<32x128xi1>, vector<32x128xf32>
    %225 = math.exp %190 : vector<32x128xf32>
    %226 = arith.select %198, %225, %224 : vector<32x128xi1>, vector<32x128xf32>
    %227 = math.tanh %190 : vector<32x128xf32>
    %228 = arith.select %203, %227, %226 : vector<32x128xi1>, vector<32x128xf32>
    %cst_99 = arith.constant -1.000000e+30 : f32
    %229 = vector.broadcast %cst_99 : f32 to vector<32x128xf32>
    %230 = arith.select %208, %190, %229 : vector<32x128xi1>, vector<32x128xf32>
    %cst_100 = arith.constant dense<0xFF800000> : vector<32xf32>
    %231 = vector.multi_reduction <maximumf>, %230, %cst_100 [1] : vector<32x128xf32> to vector<32xf32>
    %232 = vector.shape_cast %231 : vector<32xf32> to vector<32x1xf32>
    %233 = vector.broadcast %232 : vector<32x1xf32> to vector<32x128xf32>
    %234 = arith.subf %190, %233 : vector<32x128xf32>
    %235 = math.exp %234 : vector<32x128xf32>
    %cst_101 = arith.constant 0.000000e+00 : f32
    %236 = vector.broadcast %cst_101 : f32 to vector<32x128xf32>
    %237 = arith.select %208, %235, %236 : vector<32x128xi1>, vector<32x128xf32>
    %cst_102 = arith.constant dense<0.000000e+00> : vector<32xf32>
    %238 = vector.multi_reduction <add>, %237, %cst_102 [1] : vector<32x128xf32> to vector<32xf32>
    %239 = vector.shape_cast %238 : vector<32xf32> to vector<32x1xf32>
    %240 = vector.broadcast %239 : vector<32x1xf32> to vector<32x128xf32>
    %241 = arith.divf %237, %240 : vector<32x128xf32>
    %242 = arith.select %208, %241, %228 : vector<32x128xi1>, vector<32x128xf32>
    %cst_103 = arith.constant 0.000000e+00 : f32
    %243 = vector.broadcast %cst_103 : f32 to vector<32x128xf32>
    %244 = arith.select %210, %243, %242 : vector<32x128xi1>, vector<32x128xf32>
    %245 = vector.shape_cast %244 : vector<32x128xf32> to vector<4x8x128xf32>
    %c0_104 = arith.constant 0 : index
    %c0_105 = arith.constant 0 : index
    %c0_106 = arith.constant 0 : index
    %246 = vector.load %arg11[%c0_104, %c0_105, %c0_106] : memref<4x8x128xf32, #tpu.memory_space<vmem>>, vector<4x8x128xf32>
    tpu.vector_store %arg11[%c0_104, %c0_105, %c0_106], %245 {strides = array<i32>} : memref<4x8x128xf32, #tpu.memory_space<vmem>>, vector<4x8x128xf32>,
    return
  }
  func.func @transform_0(%arg0: i32, %arg1: i32) -> (i32, i32, i32) {
    %c0_i32 = arith.constant 0 : i32
    %c0_i32_0 = arith.constant 0 : i32
    return %arg1, %arg0, %c0_i32 : i32, i32, i32
  }
  func.func @transform_1(%arg0: i32, %arg1: i32) -> (i32, i32) {
    %c0_i32 = arith.constant 0 : i32
    %c0_i32_0 = arith.constant 0 : i32
    return %arg0, %c0_i32 : i32, i32
  }
  func.func @transform_2(%arg0: i32, %arg1: i32) -> (i32, i32) {
    %c0_i32 = arith.constant 0 : i32
    %c0_i32_0 = arith.constant 0 : i32
    %c0_i32_1 = arith.constant 0 : i32
    return %c0_i32, %c0_i32_0 : i32, i32
  }
  func.func @transform_3(%arg0: i32, %arg1: i32) -> (i32, i32) {
    %c0_i32 = arith.constant 0 : i32
    %c0_i32_0 = arith.constant 0 : i32
    %c0_i32_1 = arith.constant 0 : i32
    return %c0_i32, %c0_i32_0 : i32, i32
  }
  func.func @transform_4(%arg0: i32, %arg1: i32) -> (i32, i32) {
    %c0_i32 = arith.constant 0 : i32
    %c0_i32_0 = arith.constant 0 : i32
    %c0_i32_1 = arith.constant 0 : i32
    return %c0_i32, %c0_i32_0 : i32, i32
  }
  func.func @transform_5(%arg0: i32, %arg1: i32) -> (i32, i32) {
    %c0_i32 = arith.constant 0 : i32
    %c0_i32_0 = arith.constant 0 : i32
    %c0_i32_1 = arith.constant 0 : i32
    return %c0_i32, %c0_i32_0 : i32, i32
  }
  func.func @transform_6(%arg0: i32, %arg1: i32) -> (i32, i32) {
    %c0_i32 = arith.constant 0 : i32
    %c0_i32_0 = arith.constant 0 : i32
    %c0_i32_1 = arith.constant 0 : i32
    return %c0_i32, %c0_i32_0 : i32, i32
  }
  func.func @transform_7(%arg0: i32, %arg1: i32) -> (i32, i32) {
    %c0_i32 = arith.constant 0 : i32
    %c0_i32_0 = arith.constant 0 : i32
    %c0_i32_1 = arith.constant 0 : i32
    return %c0_i32, %c0_i32_0 : i32, i32
  }
  func.func @transform_8(%arg0: i32, %arg1: i32) -> (i32, i32) {
    %c0_i32 = arith.constant 0 : i32
    %c0_i32_0 = arith.constant 0 : i32
    %c0_i32_1 = arith.constant 0 : i32
    return %c0_i32, %c0_i32_0 : i32, i32
  }
  func.func @transform_9(%arg0: i32, %arg1: i32) -> (i32, i32, i32) {
    %c0_i32 = arith.constant 0 : i32
    %c0_i32_0 = arith.constant 0 : i32
    return %arg1, %arg0, %c0_i32 : i32, i32, i32
  }
  func.func @transform_10(%arg0: i32, %arg1: i32) -> (i32, i32, i32) {
    %c0_i32 = arith.constant 0 : i32
    %c0_i32_0 = arith.constant 0 : i32
    %c0_i32_1 = arith.constant 0 : i32
    return %c0_i32, %arg0, %c0_i32_0 : i32, i32, i32
  }
  func.func @transform_11(%arg0: i32, %arg1: i32) -> (i32, i32, i32) {
    %c0_i32 = arith.constant 0 : i32
    %c0_i32_0 = arith.constant 0 : i32
    %c0_i32_1 = arith.constant 0 : i32
    return %c0_i32, %arg0, %c0_i32_0 : i32, i32, i32
  }
}

</mosaic_0001>

<llo_original>
// kernel: tpu_custom_call.1
$region0: #{tpu_custom_call.1}
  #allocation0 [shape = 'u32[]', space=smem, size = 0x4, offset = 0x4, fixed_abs, tag = 'smem constant byte address 0x4 - core index']
  #allocation1 [shape = 'u32[144,128]{1,0:T(1,128)}', space=vmem, size = 0x12000, scoped, tag = 'internal scratch']
  #allocation2 [shape = 'bf16[4,8,128]{2,1,0:T(8,128)(2,1)}', space=vmem, size = 0x2000, scoped, tag = 'scratch operand']
  #allocation3 [shape = 'bf16[4,8,32]{2,1,0:T(8,128)(2,1)}', space=vmem, size = 0x2000, scoped, tag = 'scratch operand']
  #allocation4 [shape = 'f32[8,32]{1,0:T(8,128)}', space=vmem, size = 0x1000, scoped, tag = 'scratch operand']
  #allocation5 [shape = 'f32[8,32]{1,0:T(8,128)}', space=vmem, size = 0x1000, scoped, tag = 'scratch operand']
  %s0 = inlined_call_operand.hbm [shape: f32[8,8,21], index: 0, kind: input, shape index: {}]
  %s1 = inlined_call_operand.hbm [shape: f32[8,16], index: 1, kind: input, shape index: {}]
  %s2 = inlined_call_operand.hbm [shape: f32[16,64], index: 2, kind: input, shape index: {}]
  %s3 = inlined_call_operand.vmem [shape: f32[1,64], index: 3, kind: input, shape index: {}]
  %s4 = inlined_call_operand.hbm [shape: bf16[21,128], index: 4, kind: input, shape index: {}]
  %s5 = inlined_call_operand.vmem [shape: bf16[32,128], index: 5, kind: input, shape index: {}]
  %s6 = inlined_call_operand.vmem [shape: f32[1,128], index: 6, kind: input, shape index: {}]
  %s7 = inlined_call_operand.hbm [shape: bf16[32,128], index: 7, kind: input, shape index: {}]
  %s8 = inlined_call_operand.vmem [shape: f32[1,128], index: 8, kind: input, shape index: {}]
  %s9 = inlined_call_operand.hbm [shape: f32[8,8,128], index: 9, kind: output, shape index: {0}]
  %s10 = inlined_call_operand.hbm [shape: f32[1,8,32], index: 10, kind: output, shape index: {1}]
  %s11 = inlined_call_operand.hbm [shape: f32[1,8,32], index: 11, kind: output, shape index: {2}]
  %12 = xla_tuple %s9, %s10, %s11
  %s13 = sld [smem:[#allocation0]]
  $region109: #{tpu_custom_call.1} parent=0
    _
  %s15 = ssub.s32 1, %s13
  %s16 = scalar_select 0, %s15, %s13
  $region1: #{tpu_custom_call.1} parent=0
    #allocation6 [shape = 'u8[32768]{0}', space=vmem, size = 0x8000, scoped, tag = 'input window, operand 0']
    #allocation7 [shape = 's32[2]{0}', space=sflag, size = 0x8, scoped, tag = 'scoped memory for tpu_custom_call.1']
    #allocation8 [shape = 's32[2]{0}', space=sflag, size = 0x8, scoped, tag = 'scoped memory for tpu_custom_call.1']
    #allocation9 [shape = 'u8[4096]{0}', space=vmem, size = 0x1000, scoped, tag = 'input window, operand 1, single buffered']
    #allocation10 [shape = 's32[1]{0}', space=sflag, size = 0x4, scoped, tag = 'scoped memory for tpu_custom_call.1']
    #allocation11 [shape = 'u8[8192]{0}', space=vmem, size = 0x2000, scoped, tag = 'input window, operand 2, single buffered']
    #allocation12 [shape = 'u8[6144]{0}', space=vmem, size = 0x1800, scoped, tag = 'input window, operand 4, single buffered']
    #allocation13 [shape = 's32[1]{0}', space=sflag, size = 0x4, scoped, tag = 'scoped memory for tpu_custom_call.1']
    #allocation14 [shape = 'u8[8192]{0}', space=vmem, size = 0x2000, scoped, tag = 'input window, operand 7, single buffered']
    #allocation15 [shape = 'u8[32768]{0}', space=vmem, size = 0x8000, scoped, tag = 'output window, operand 0']
    #allocation16 [shape = 'u8[4096]{0}', space=vmem, size = 0x1000, scoped, tag = 'output window, operand 1, single buffered']
    #allocation17 [shape = 's32[1]{0}', space=sflag, size = 0x4, scoped, tag = 'scoped memory for tpu_custom_call.1']
    #allocation18 [shape = 'u8[4096]{0}', space=vmem, size = 0x1000, scoped, tag = 'output window, operand 2, single buffered']
    %17 = vsyncpa [#allocation7], 0
    %s18 = scalar_lea.sflag [#allocation7], 1
    %19 = vsyncpa %s18, 0
    %20 = vsyncpa [#allocation10], 0
    %21 = vsyncpa [#allocation13], 0
    %22 = vsyncpa [#allocation8], 0
    %s23 = scalar_lea.sflag [#allocation8], 1
    %24 = vsyncpa %s23, 0
    %25 = vsyncpa [#allocation17], 0
    loop: start=0, step=1, limit=4
    $region2: #{tpu_custom_call.1} parent=1 // loop_pre_header
      _
    $region3: #{tpu_custom_call.1} parent=1 // loop_header
      %s27 = sphi 0, %s31
      %p28 = scmp.ge.s32.totalorder %s27, 4
      %s34 = sphi 0, %s46
      %s35 = sphi 0, %s42
      %s36 = sphi 0, %s34
      %s37 = sphi 0, %s35
      %s38 = sphi 0, %s36
      %s39 = sphi 0, %s37
      %s51 = sphi 0, %s53
      %s54 = sphi 0, %s51
      %s55 = sphi 0, %s54
      %s71 = sphi 0, %s55
      %s77 = sphi 0, %s79
      %s80 = sphi 0, %s77
      %s81 = sphi 0, %s80
      %s97 = sphi 0, %s81
      %s101 = sphi 0, %s101
      %s103 = sphi 0, %s101
      %s104 = sphi 0, %s103
      %s118 = sphi 0, %s104
      %s122 = sphi 0, %s122
      %s124 = sphi 0, %s122
      %s125 = sphi 0, %s124
      %s139 = sphi 0, %s125
      %s143 = sphi 0, %s143
      %s145 = sphi 0, %s143
      %s146 = sphi 0, %s145
      %s160 = sphi 0, %s146
      %s164 = sphi 0, %s164
      %s166 = sphi 0, %s164
      %s167 = sphi 0, %s166
      %s181 = sphi 0, %s167
      %s185 = sphi 0, %s185
      %s187 = sphi 0, %s185
      %s188 = sphi 0, %s187
      %s202 = sphi 0, %s188
      %s206 = sphi 0, %s206
      %s208 = sphi 0, %s206
      %s209 = sphi 0, %s208
      %s223 = sphi 0, %s209
      %s227 = sphi 0, %s227
      %s229 = sphi 0, %s227
      %s230 = sphi 0, %s229
      %s244 = sphi 0, %s230
      %s252 = sphi 0, %s254
      %s255 = sphi 0, %s252
      %s256 = sphi 0, %s255
      %s272 = sphi 0, %s256
      %s278 = sphi 0, %s280
      %s281 = sphi 0, %s278
      %s282 = sphi 0, %s281
      %s298 = sphi 0, %s282
      %s304 = sphi 0, %s306
      %s307 = sphi 0, %s304
      %s308 = sphi 0, %s307
      %s324 = sphi 0, %s308
    $region4: #{tpu_custom_call.1} parent=1 // loop_header_branch
      %30 = sbr.rel (%p28) target = $region8
    $region5: #{tpu_custom_call.1} parent=1 // loop_body
      %s32 = ssub.s32 %s27, 1
      %s33 = ssub.s32 %s27, 2
      %s40 = sadd.s32 1, %s35
      %p41 = scmp.ge.s32.totalorder %s40, 2
      %s42 = scalar_select %p41, 0, %s40
      %s43 = sadd.s32 1, %s34
      %s44 = scalar_select %p41, %s43, %s34
      %p45 = scmp.ge.s32.totalorder %s44, 1
      %s46 = scalar_select %p45, 0, %s44
      %s47 = ssub.s32 %s35, %s42
      %s48 = ssub.s32 %s34, %s46
      %s49 = sor.u32 %s47, %s48
      %p50 = scmp.eq.s32.totalorder %s49, 0
      %s52 = sadd.s32 %s51, 1
      %s53 = scalar_select %p50, %s51, %s52
      %p56 = pneg %p50
      %p57 = scmp.eq.s32.totalorder %s27, 1
      %p58 = por %p56, %p57
      %p59 = scmp.ne.s32.totalorder %s51, %s54
      %p60 = scmp.eq.s32.totalorder %s27, 0
      %p61 = por %p59, %p60
      %p62 = scmp.ne.s32.totalorder %s51, %s54
      %p63 = scmp.eq.s32.totalorder %s32, 1
      %p64 = por %p62, %p63
      %p65 = scmp.ne.s32.totalorder %s54, %s55
      %p66 = scmp.eq.s32.totalorder %s32, 0
      %p67 = por %p65, %p66
      %p68 = scmp.ne.s32.totalorder %s54, %s55
      %p69 = scmp.eq.s32.totalorder %s33, 1
      %p70 = por %p68, %p69
      %p72 = scmp.ne.s32.totalorder %s55, %s71
      %p73 = scmp.eq.s32.totalorder %s33, 0
      %p74 = por %p72, %p73
      %s75 = ssub.s32 %s34, %s46
      %p76 = scmp.eq.s32.totalorder %s75, 0
      %s78 = sadd.s32 %s77, 1
      %s79 = scalar_select %p76, %s77, %s78
      %p82 = pneg %p76
      %p83 = scmp.eq.s32.totalorder %s27, 1
      %p84 = por %p82, %p83
      %p85 = scmp.ne.s32.totalorder %s77, %s80
      %p86 = scmp.eq.s32.totalorder %s27, 0
      %p87 = por %p85, %p86
      %p88 = scmp.ne.s32.totalorder %s77, %s80
      %p89 = scmp.eq.s32.totalorder %s32, 1
      %p90 = por %p88, %p89
      %p91 = scmp.ne.s32.totalorder %s80, %s81
      %p92 = scmp.eq.s32.totalorder %s32, 0
      %p93 = por %p91, %p92
      %p94 = scmp.ne.s32.totalorder %s80, %s81
      %p95 = scmp.eq.s32.totalorder %s33, 1
      %p96 = por %p94, %p95
      %p98 = scmp.ne.s32.totalorder %s81, %s97
      %p99 = scmp.eq.s32.totalorder %s33, 0
      %p100 = por %p98, %p99
      %s102 = sadd.s32 %s101, 1
      %p105 = scmp.eq.s32.totalorder %s27, 1
      %p106 = scmp.ne.s32.totalorder %s101, %s103
      %p107 = scmp.eq.s32.totalorder %s27, 0
      %p108 = por %p106, %p107
      %p109 = scmp.ne.s32.totalorder %s101, %s103
      %p110 = scmp.eq.s32.totalorder %s32, 1
      %p111 = por %p109, %p110
      %p112 = scmp.ne.s32.totalorder %s103, %s104
      %p113 = scmp.eq.s32.totalorder %s32, 0
      %p114 = por %p112, %p113
      %p115 = scmp.ne.s32.totalorder %s103, %s104
      %p116 = scmp.eq.s32.totalorder %s33, 1
      %p117 = por %p115, %p116
      %p119 = scmp.ne.s32.totalorder %s104, %s118
      %p120 = scmp.eq.s32.totalorder %s33, 0
      %p121 = por %p119, %p120
      %s123 = sadd.s32 %s122, 1
      %p126 = scmp.eq.s32.totalorder %s27, 1
      %p127 = scmp.ne.s32.totalorder %s122, %s124
      %p128 = scmp.eq.s32.totalorder %s27, 0
      %p129 = por %p127, %p128
      %p130 = scmp.ne.s32.totalorder %s122, %s124
      %p131 = scmp.eq.s32.totalorder %s32, 1
      %p132 = por %p130, %p131
      %p133 = scmp.ne.s32.totalorder %s124, %s125
      %p134 = scmp.eq.s32.totalorder %s32, 0
      %p135 = por %p133, %p134
      %p136 = scmp.ne.s32.totalorder %s124, %s125
      %p137 = scmp.eq.s32.totalorder %s33, 1
      %p138 = por %p136, %p137
      %p140 = scmp.ne.s32.totalorder %s125, %s139
      %p141 = scmp.eq.s32.totalorder %s33, 0
      %p142 = por %p140, %p141
      %s144 = sadd.s32 %s143, 1
      %p147 = scmp.eq.s32.totalorder %s27, 1
      %p148 = scmp.ne.s32.totalorder %s143, %s145
      %p149 = scmp.eq.s32.totalorder %s27, 0
      %p150 = por %p148, %p149
      %p151 = scmp.ne.s32.totalorder %s143, %s145
      %p152 = scmp.eq.s32.totalorder %s32, 1
      %p153 = por %p151, %p152
      %p154 = scmp.ne.s32.totalorder %s145, %s146
      %p155 = scmp.eq.s32.totalorder %s32, 0
      %p156 = por %p154, %p155
      %p157 = scmp.ne.s32.totalorder %s145, %s146
      %p158 = scmp.eq.s32.totalorder %s33, 1
      %p159 = por %p157, %p158
      %p161 = scmp.ne.s32.totalorder %s146, %s160
      %p162 = scmp.eq.s32.totalorder %s33, 0
      %p163 = por %p161, %p162
      %s165 = sadd.s32 %s164, 1
      %p168 = scmp.eq.s32.totalorder %s27, 1
      %p169 = scmp.ne.s32.totalorder %s164, %s166
      %p170 = scmp.eq.s32.totalorder %s27, 0
      %p171 = por %p169, %p170
      %p172 = scmp.ne.s32.totalorder %s164, %s166
      %p173 = scmp.eq.s32.totalorder %s32, 1
      %p174 = por %p172, %p173
      %p175 = scmp.ne.s32.totalorder %s166, %s167
      %p176 = scmp.eq.s32.totalorder %s32, 0
      %p177 = por %p175, %p176
      %p178 = scmp.ne.s32.totalorder %s166, %s167
      %p179 = scmp.eq.s32.totalorder %s33, 1
      %p180 = por %p178, %p179
      %p182 = scmp.ne.s32.totalorder %s167, %s181
      %p183 = scmp.eq.s32.totalorder %s33, 0
      %p184 = por %p182, %p183
      %s186 = sadd.s32 %s185, 1
      %p189 = scmp.eq.s32.totalorder %s27, 1
      %p190 = scmp.ne.s32.totalorder %s185, %s187
      %p191 = scmp.eq.s32.totalorder %s27, 0
      %p192 = por %p190, %p191
      %p193 = scmp.ne.s32.totalorder %s185, %s187
      %p194 = scmp.eq.s32.totalorder %s32, 1
      %p195 = por %p193, %p194
      %p196 = scmp.ne.s32.totalorder %s187, %s188
      %p197 = scmp.eq.s32.totalorder %s32, 0
      %p198 = por %p196, %p197
      %p199 = scmp.ne.s32.totalorder %s187, %s188
      %p200 = scmp.eq.s32.totalorder %s33, 1
      %p201 = por %p199, %p200
      %p203 = scmp.ne.s32.totalorder %s188, %s202
      %p204 = scmp.eq.s32.totalorder %s33, 0
      %p205 = por %p203, %p204
      %s207 = sadd.s32 %s206, 1
      %p210 = scmp.eq.s32.totalorder %s27, 1
      %p211 = scmp.ne.s32.totalorder %s206, %s208
      %p212 = scmp.eq.s32.totalorder %s27, 0
      %p213 = por %p211, %p212
      %p214 = scmp.ne.s32.totalorder %s206, %s208
      %p215 = scmp.eq.s32.totalorder %s32, 1
      %p216 = por %p214, %p215
      %p217 = scmp.ne.s32.totalorder %s208, %s209
      %p218 = scmp.eq.s32.totalorder %s32, 0
      %p219 = por %p217, %p218
      %p220 = scmp.ne.s32.totalorder %s208, %s209
      %p221 = scmp.eq.s32.totalorder %s33, 1
      %p222 = por %p220, %p221
      %p224 = scmp.ne.s32.totalorder %s209, %s223
      %p225 = scmp.eq.s32.totalorder %s33, 0
      %p226 = por %p224, %p225
      %s228 = sadd.s32 %s227, 1
      %p231 = scmp.eq.s32.totalorder %s27, 1
      %p232 = scmp.ne.s32.totalorder %s227, %s229
      %p233 = scmp.eq.s32.totalorder %s27, 0
      %p234 = por %p232, %p233
      %p235 = scmp.ne.s32.totalorder %s227, %s229
      %p236 = scmp.eq.s32.totalorder %s32, 1
      %p237 = por %p235, %p236
      %p238 = scmp.ne.s32.totalorder %s229, %s230
      %p239 = scmp.eq.s32.totalorder %s32, 0
      %p240 = por %p238, %p239
      %p241 = scmp.ne.s32.totalorder %s229, %s230
      %p242 = scmp.eq.s32.totalorder %s33, 1
      %p243 = por %p241, %p242
      %p245 = scmp.ne.s32.totalorder %s230, %s244
      %p246 = scmp.eq.s32.totalorder %s33, 0
      %p247 = por %p245, %p246
      %s248 = ssub.s32 %s35, %s42
      %s249 = ssub.s32 %s34, %s46
      %s250 = sor.u32 %s248, %s249
      %p251 = scmp.eq.s32.totalorder %s250, 0
      %s253 = sadd.s32 %s252, 1
      %s254 = scalar_select %p251, %s252, %s253
      %p257 = pneg %p251
      %p258 = scmp.eq.s32.totalorder %s27, 1
      %p259 = por %p257, %p258
      %p260 = scmp.ne.s32.totalorder %s252, %s255
      %p261 = scmp.eq.s32.totalorder %s27, 0
      %p262 = por %p260, %p261
      %p263 = scmp.ne.s32.totalorder %s252, %s255
      %p264 = scmp.eq.s32.totalorder %s32, 1
      %p265 = por %p263, %p264
      %p266 = scmp.ne.s32.totalorder %s255, %s256
      %p267 = scmp.eq.s32.totalorder %s32, 0
      %p268 = por %p266, %p267
      %p269 = scmp.ne.s32.totalorder %s255, %s256
      %p270 = scmp.eq.s32.totalorder %s33, 1
      %p271 = por %p269, %p270
      %p273 = scmp.ne.s32.totalorder %s256, %s272
      %p274 = scmp.eq.s32.totalorder %s33, 0
      %p275 = por %p273, %p274
      %s276 = ssub.s32 %s34, %s46
      %p277 = scmp.eq.s32.totalorder %s276, 0
      %s279 = sadd.s32 %s278, 1
      %s280 = scalar_select %p277, %s278, %s279
      %p283 = pneg %p277
      %p284 = scmp.eq.s32.totalorder %s27, 1
      %p285 = por %p283, %p284
      %p286 = scmp.ne.s32.totalorder %s278, %s281
      %p287 = scmp.eq.s32.totalorder %s27, 0
      %p288 = por %p286, %p287
      %p289 = scmp.ne.s32.totalorder %s278, %s281
      %p290 = scmp.eq.s32.totalorder %s32, 1
      %p291 = por %p289, %p290
      %p292 = scmp.ne.s32.totalorder %s281, %s282
      %p293 = scmp.eq.s32.totalorder %s32, 0
      %p294 = por %p292, %p293
      %p295 = scmp.ne.s32.totalorder %s281, %s282
      %p296 = scmp.eq.s32.totalorder %s33, 1
      %p297 = por %p295, %p296
      %p299 = scmp.ne.s32.totalorder %s282, %s298
      %p300 = scmp.eq.s32.totalorder %s33, 0
      %p301 = por %p299, %p300
      %s302 = ssub.s32 %s34, %s46
      %p303 = scmp.eq.s32.totalorder %s302, 0
      %s305 = sadd.s32 %s304, 1
      %s306 = scalar_select %p303, %s304, %s305
      %p309 = pneg %p303
      %p310 = scmp.eq.s32.totalorder %s27, 1
      %p311 = por %p309, %p310
      %p312 = scmp.ne.s32.totalorder %s304, %s307
      %p313 = scmp.eq.s32.totalorder %s27, 0
      %p314 = por %p312, %p313
      %p315 = scmp.ne.s32.totalorder %s304, %s307
      %p316 = scmp.eq.s32.totalorder %s32, 1
      %p317 = por %p315, %p316
      %p318 = scmp.ne.s32.totalorder %s307, %s308
      %p319 = scmp.eq.s32.totalorder %s32, 0
      %p320 = por %p318, %p319
      %p321 = scmp.ne.s32.totalorder %s307, %s308
      %p322 = scmp.eq.s32.totalorder %s33, 1
      %p323 = por %p321, %p322
      %p325 = scmp.ne.s32.totalorder %s308, %s324
      %p326 = scmp.eq.s32.totalorder %s33, 0
      %p327 = por %p325, %p326
      %p328 = scmp.le.s32.totalorder 1, %s27
      %p329 = scmp.lt.s32.totalorder %s27, 3
      %p330 = pnand %p328, %p329
      %p331 = pneg %p330
      // Predicated region
      $region9: #{tpu_custom_call.1} parent=5 // pred_check
        _
      $region10: #{tpu_custom_call.1} parent=5 // pred_check_branch
        %333 = sbr.rel (%p330) target = $region12
      $region11: #{tpu_custom_call.1} parent=5 // pred_region
        %s334 = ssub.s32 %s27, 1
        // Predicated region
        $region13: #{tpu_custom_call.1} parent=11 // pred_check
          %p335 = pneg %p93
        $region14: #{tpu_custom_call.1} parent=11 // pred_check_branch
          %337 = sbr.rel (%p335) target = $region16
        $region15: #{tpu_custom_call.1} parent=11 // pred_region
          %s339 = ssub.s32 128, 128
          %340 = vsyncadd [#allocation10], %s339
          %s341 = smul.addr %s36, 128
          %s342 = scalar_lea.hbm %s1, %s341
          %s344 = sshll.u32 [#allocation9], 4
          %s345 = int_to_ptr.vmem [resolvable:$true] %s344
          %347 = dma.hbm_to_vmem [thread:$0]  %s342, 128, %s345, [#allocation10]
        $region16: #{tpu_custom_call.1} parent=11 // pred_fallthru
          _
        // Predicated region
        $region17: #{tpu_custom_call.1} parent=11 // pred_check
          %p348 = pneg %p114
        $region18: #{tpu_custom_call.1} parent=11 // pred_check_branch
          %350 = sbr.rel (%p348) target = $region20
        $region19: #{tpu_custom_call.1} parent=11 // pred_region
          %s352 = ssub.s32 256, 256
          %353 = vsyncadd [#allocation10], %s352
          %s354 = sshll.u32 [#allocation11], 4
          %s355 = int_to_ptr.vmem [resolvable:$true] %s354
          %360 = dma.hbm_to_vmem [thread:$0]  %s2, 256, %s355, [#allocation10], 128, 128, 8
        $region20: #{tpu_custom_call.1} parent=11 // pred_fallthru
          _
        // Predicated region
        $region21: #{tpu_custom_call.1} parent=11 // pred_check
          %p361 = pneg %p135
        $region22: #{tpu_custom_call.1} parent=11 // pred_check_branch
          %363 = sbr.rel (%p361) target = $region24
        $region23: #{tpu_custom_call.1} parent=11 // pred_region
          _
        $region24: #{tpu_custom_call.1} parent=11 // pred_fallthru
          _
        // Predicated region
        $region25: #{tpu_custom_call.1} parent=11 // pred_check
          %p364 = pneg %p156
        $region26: #{tpu_custom_call.1} parent=11 // pred_check_branch
          %366 = sbr.rel (%p364) target = $region28
        $region27: #{tpu_custom_call.1} parent=11 // pred_region
          %s368 = ssub.s32 192, 192
          %369 = vsyncadd [#allocation13], %s368
          %s370 = sshll.u32 [#allocation12], 4
          %s371 = int_to_ptr.vmem [resolvable:$true] %s370
          %376 = dma.hbm_to_vmem [thread:$0]  %s4, 192, %s371, [#allocation13], 64, 64, 4
        $region28: #{tpu_custom_call.1} parent=11 // pred_fallthru
          _
        // Predicated region
        $region29: #{tpu_custom_call.1} parent=11 // pred_check
          %p377 = pneg %p177
        $region30: #{tpu_custom_call.1} parent=11 // pred_check_branch
          %379 = sbr.rel (%p377) target = $region32
        $region31: #{tpu_custom_call.1} parent=11 // pred_region
          _
        $region32: #{tpu_custom_call.1} parent=11 // pred_fallthru
          _
        // Predicated region
        $region33: #{tpu_custom_call.1} parent=11 // pred_check
          %p380 = pneg %p198
        $region34: #{tpu_custom_call.1} parent=11 // pred_check_branch
          %382 = sbr.rel (%p380) target = $region36
        $region35: #{tpu_custom_call.1} parent=11 // pred_region
          _
        $region36: #{tpu_custom_call.1} parent=11 // pred_fallthru
          _
        // Predicated region
        $region37: #{tpu_custom_call.1} parent=11 // pred_check
          %p383 = pneg %p219
        $region38: #{tpu_custom_call.1} parent=11 // pred_check_branch
          %385 = sbr.rel (%p383) target = $region40
        $region39: #{tpu_custom_call.1} parent=11 // pred_region
          %s387 = ssub.s32 256, 256
          %388 = vsyncadd [#allocation13], %s387
          %s389 = sshll.u32 [#allocation14], 4
          %s390 = int_to_ptr.vmem [resolvable:$true] %s389
          %395 = dma.hbm_to_vmem [thread:$0]  %s7, 256, %s390, [#allocation13], 64, 64, 4
        $region40: #{tpu_custom_call.1} parent=11 // pred_fallthru
          _
        // Predicated region
        $region41: #{tpu_custom_call.1} parent=11 // pred_check
          %p396 = pneg %p240
        $region42: #{tpu_custom_call.1} parent=11 // pred_check_branch
          %398 = sbr.rel (%p396) target = $region44
        $region43: #{tpu_custom_call.1} parent=11 // pred_region
          _
        $region44: #{tpu_custom_call.1} parent=11 // pred_fallthru
          _
      $region12: #{tpu_custom_call.1} parent=5 // pred_fallthru
        _
      %p399 = scmp.lt.s32.totalorder %s27, 2
      // Predicated region
      $region45: #{tpu_custom_call.1} parent=5 // pred_check
        %p400 = pneg %p399
      $region46: #{tpu_custom_call.1} parent=5 // pred_check_branch
        %402 = sbr.rel (%p400) target = $region48
      $region47: #{tpu_custom_call.1} parent=5 // pred_region
        // Predicated region
        $region49: #{tpu_custom_call.1} parent=47 // pred_check
          %p403 = pneg %p61
        $region50: #{tpu_custom_call.1} parent=47 // pred_check_branch
          %405 = sbr.rel (%p403) target = $region52
        $region51: #{tpu_custom_call.1} parent=47 // pred_region
          %s406 = sand.u32 %s51, 1
          %s407 = scalar_lea.sflag [#allocation7], %s406
          %s408 = sand.u32 %s51, 1
          %s409 = smul.addr %s408, 32
          %s410 = scalar_lea.vmem [#allocation6], %s409
          %s411 = smul.u32 4, %s35
          %s413 = ssub.s32 512, 512
          %414 = vsyncadd %s407, %s413
          %s415 = sadd.s32 %s34, %s411
          %s416 = smul.addr %s415, 128
          %s417 = scalar_lea.hbm %s0, %s416
          %s418 = sshll.u32 %s410, 4
          %s419 = int_to_ptr.vmem [resolvable:$true] %s418
          %424 = dma.hbm_to_vmem [thread:$0]  %s417, 512, %s419, %s407, 128, 128, 8
        $region52: #{tpu_custom_call.1} parent=47 // pred_fallthru
          _
      $region48: #{tpu_custom_call.1} parent=5 // pred_fallthru
        _
      %p425 = scmp.le.s32.totalorder 1, %s27
      %p426 = scmp.lt.s32.totalorder %s27, 3
      %p427 = pnand %p425, %p426
      %p428 = pneg %p427
      // Predicated region
      $region53: #{tpu_custom_call.1} parent=5 // pred_check
        _
      $region54: #{tpu_custom_call.1} parent=5 // pred_check_branch
        %430 = sbr.rel (%p427) target = $region56
      $region55: #{tpu_custom_call.1} parent=5 // pred_region
        %s431 = ssub.s32 %s27, 1
        %s432 = sand.u32 %s54, 1
        %s433 = scalar_lea.sflag [#allocation7], %s432
        %s434 = sand.u32 %s54, 1
        %s435 = smul.addr %s434, 32
        %s436 = scalar_lea.vmem [#allocation6], %s435
        // Predicated region
        $region57: #{tpu_custom_call.1} parent=55 // pred_check
          %p437 = pneg %p67
        $region58: #{tpu_custom_call.1} parent=55 // pred_check_branch
          %439 = sbr.rel (%p437) target = $region60
        $region59: #{tpu_custom_call.1} parent=55 // pred_region
          %440 = dma.done %s433, 512
        $region60: #{tpu_custom_call.1} parent=55 // pred_fallthru
          _
        // Predicated region
        $region61: #{tpu_custom_call.1} parent=55 // pred_check
          %p441 = pneg %p93
        $region62: #{tpu_custom_call.1} parent=55 // pred_check_branch
          %443 = sbr.rel (%p441) target = $region64
        $region63: #{tpu_custom_call.1} parent=55 // pred_region
          %444 = dma.done [#allocation10], 128
        $region64: #{tpu_custom_call.1} parent=55 // pred_fallthru
          _
        // Predicated region
        $region65: #{tpu_custom_call.1} parent=55 // pred_check
          %p445 = pneg %p114
        $region66: #{tpu_custom_call.1} parent=55 // pred_check_branch
          %447 = sbr.rel (%p445) target = $region68
        $region67: #{tpu_custom_call.1} parent=55 // pred_region
          %448 = dma.done [#allocation10], 256
        $region68: #{tpu_custom_call.1} parent=55 // pred_fallthru
          _
        // Predicated region
        $region69: #{tpu_custom_call.1} parent=55 // pred_check
          %p449 = pneg %p156
        $region70: #{tpu_custom_call.1} parent=55 // pred_check_branch
          %451 = sbr.rel (%p449) target = $region72
        $region71: #{tpu_custom_call.1} parent=55 // pred_region
          %452 = dma.done [#allocation13], 192
        $region72: #{tpu_custom_call.1} parent=55 // pred_fallthru
          _
        // Predicated region
        $region73: #{tpu_custom_call.1} parent=55 // pred_check
          %p453 = pneg %p219
        $region74: #{tpu_custom_call.1} parent=55 // pred_check_branch
          %455 = sbr.rel (%p453) target = $region76
        $region75: #{tpu_custom_call.1} parent=55 // pred_region
          %456 = dma.done [#allocation13], 256
        $region76: #{tpu_custom_call.1} parent=55 // pred_fallthru
          _
        %s457 = sand.u32 %s54, 1
        %s458 = scalar_lea.sflag [#allocation7], %s457
        %s459 = sand.u32 %s54, 1
        %s460 = smul.addr %s459, 32
        %s461 = scalar_lea.vmem [#allocation6], %s460
        %p462 = pneg %p67
        %p463 = pneg %p64
        %p464 = pneg %p93
        %p465 = pneg %p90
        %p466 = pneg %p114
        %p467 = pneg %p111
        %p468 = pneg %p135
        %p469 = pneg %p132
        %p470 = pneg %p156
        %p471 = pneg %p153
        %p472 = pneg %p177
        %p473 = pneg %p174
        %p474 = pneg %p198
        %p475 = pneg %p195
        %p476 = pneg %p219
        %p477 = pneg %p216
        %p478 = pneg %p240
        %p479 = pneg %p237
        %p480 = pneg %p268
        %p481 = pneg %p265
        %s482 = sand.u32 %s255, 1
        %s483 = scalar_lea.sflag [#allocation8], %s482
        %s484 = sand.u32 %s255, 1
        %s485 = smul.addr %s484, 32
        %s486 = scalar_lea.vmem [#allocation15], %s485
        %p487 = pneg %p294
        %p488 = pneg %p291
        %p489 = pneg %p320
        %p490 = pneg %p317
        %s491 = smul.u32 4, %s37
        %s492 = smul.u32 4, %s37
        %p494 = scmp.eq.s32.totalorder %s37, 0
        // Predicated region
        $region77: #{tpu_custom_call.1} parent=55 // pred_check
          %p495 = pneg %p494
        $region78: #{tpu_custom_call.1} parent=55 // pred_check_branch
          %497 = sbr.rel (%p495) target = $region80
        $region79: #{tpu_custom_call.1} parent=55 // pred_region
          %v498 = vld [vmem:[#allocation9] sm:$0xff]
          %v499 = vld [vmem:[#allocation11] sm:$0xff]
          %v500 = vld [vmem:[#allocation11 + $0x8] sm:$0xff]
          %v501 = vld [vmem:[%s3] sm:$0x1]
          %v503 = vlaneseq
          %v504 = vshrl.u32 %v503, 7
          %v505 = vsub.s32 0, %v504
          %v506 = vrot.slane %v501, %v505
          %vm508 = vcmask 130048
          %v510 = vsel %vm508, %v498, 0
          %512 = vmatprep.subr.mxu0 0.0
          %513 = vmatpush1.msra.mxu0 %v499
          %514 = vmatprep.subr.mxu0 0.0
          %515 = vmatpush1.msra.mxu0 %v500
          %516 = vmatprep.subr.mxu0 0.0
          %517 = vmatpush1.msra.mxu0 0.0
          %518 = vmatprep.subr.mxu0 0.0
          %519 = vmatpush1.msra.mxu0 0.0
          %520 = vmatprep.subr.mxu0 0.0
          %521 = vmatpush1.msra.mxu0 0.0
          %522 = vmatprep.subr.mxu0 0.0
          %523 = vmatpush1.msra.mxu0 0.0
          %524 = vmatprep.subr.mxu0 0.0
          %525 = vmatpush1.msra.mxu0 0.0
          %526 = vmatprep.subr.mxu0 0.0
          %527 = vmatpush1.msra.mxu0 0.0
          %528 = vmatprep.subr.mxu0 0.0
          %529 = vmatpush1.msra.mxu0 0.0
          %530 = vmatprep.subr.mxu0 0.0
          %531 = vmatpush1.msra.mxu0 0.0
          %532 = vmatprep.subr.mxu0 0.0
          %533 = vmatpush1.msra.mxu0 0.0
          %534 = vmatprep.subr.mxu0 0.0
          %535 = vmatpush1.msra.mxu0 0.0
          %536 = vmatprep.subr.mxu0 0.0
          %537 = vmatpush1.msra.mxu0 0.0
          %538 = vmatprep.subr.mxu0 0.0
          %539 = vmatpush1.msra.mxu0 0.0
          %540 = vmatprep.subr.mxu0 0.0
          %541 = vmatpush1.msra.mxu0 0.0
          %542 = vmatprep.subr.mxu0 0.0
          %543 = vmatpush1.msra.mxu0 0.0
          %544 = vmatprep.subr.mxu0 0.0
          %545 = vmatpush1.msra.mxu0 0.0
          %546 = vmatprep.subr.mxu0 0.0
          %547 = vmatpush1.msra.mxu0 0.0
          %548 = vmatprep.subr.mxu0 0.0
          %549 = vmatpush1.msra.mxu0 0.0
          %550 = vmatprep.subr.mxu0 0.0
          %551 = vmatpush1.msra.mxu0 0.0
          %552 = vmatprep.subr.mxu0 0.0
          %553 = vmatpush1.msra.mxu0 0.0
          %554 = vmatprep.subr.mxu0 0.0
          %555 = vmatpush1.msra.mxu0 0.0
          %556 = vmatprep.subr.mxu0 0.0
          %557 = vmatpush1.msra.mxu0 0.0
          %558 = vmatprep.subr.mxu0 0.0
          %559 = vmatpush1.msra.mxu0 0.0
          %560 = vmatprep.subr.mxu0 0.0
          %561 = vmatpush1.msra.mxu0 0.0
          %562 = vmatprep.subr.mxu0 0.0
          %563 = vmatpush1.msra.mxu0 0.0
          %564 = vmatprep.subr.mxu0 0.0
          %565 = vmatpush1.msra.mxu0 0.0
          %566 = vmatprep.subr.mxu0 0.0
          %567 = vmatpush1.msra.mxu0 0.0
          %568 = vmatprep.subr.mxu0 0.0
          %569 = vmatpush1.msra.mxu0 0.0
          %570 = vmatprep.subr.mxu0 0.0
          %571 = vmatpush1.msra.mxu0 0.0
          %572 = vmatprep.subr.mxu0 0.0
          %573 = vmatpush1.msra.mxu0 0.0
          %574 = vmatprep.subr.mxu0 0.0
          %575 = vmatpush1.msra.mxu0 0.0
          %576 = vmatprep.mubr.f32.mxu0 0.0
          %577 = vmatmul.mubr.f32.gmra.mrb[0].mxu0 %v510
          %v578 = vpop.f32.mrb[0].mxu0
          %v579 = vadd.f32 %v506, %v578
          %v580 = vpop.f32.mrb[0].mxu0
          %581 = vdwg.mxu0
          %v582 = vtanh.pop %v579
          %vm583 = vcmask 261120
          %584 = vst.msk [vmem:[#allocation4] sm:$0xff] %vm583, %v582
          %586 = vrot.lane.b32.xlu0 %v582, 96
          %v587 = vpop.permute.xlu0 %586
          %589 = vst.msk [vmem:[#allocation5] sm:$0xff] %vm583, %v587
        $region80: #{tpu_custom_call.1} parent=55 // pred_fallthru
          _
        %v590 = vld [vmem:[%s436] sm:$0xff]
        %v591 = vld [vmem:[%s436 + $0x8] sm:$0xff]
        %v592 = vld [vmem:[%s436 + $0x10] sm:$0xff]
        %v593 = vld [vmem:[%s436 + $0x18] sm:$0xff]
        %v594 = vpack.c.bf16 %v591, %v590
        %v595 = vpack.c.bf16 %v593, %v592
        %v596 = vld [vmem:[#allocation12] sm:$0xf]
        %v597 = vld [vmem:[#allocation12 + $0x4] sm:$0xf]
        %v598 = vld [vmem:[#allocation12 + $0x8] sm:$0x7]
        %v599 = vld [vmem:[%s6] sm:$0x1]
        %v601 = vlaneseq
        %v602 = vshrl.u32 %v601, 7
        %v603 = vsub.s32 0, %v602
        %v604 = vrot.slane %v599, %v603
        %v609 = vunpack.c.l.b16 %v596
        %v610 = vunpack.c.l.b16 %v597
        %v611 = vunpack.c.l.b16 %v598
        %v612 = vpack.c.b16 %v610, %v609
        %v613 = vpack.c.b16 %v611, %v611
        %vm615 = vcmask 171008
        %v617 = vsel %vm615, %v594, 0
        %v620 = vsel %vm615, %v595, 0
        %vm622 = vcmask 1041408
        %vm623 = vcmask 1042432
        %v624 = vsel %vm622, 4294967295, 65535
        %v625 = vsel %vm623, %v624, 0
        %v627 = vand.u32 %v613, %v625
        %629 = vmatprep.subr.bf16.mxu0 0
        %630 = vmatpush1.bf16.msra.mxu0 %v612
        %631 = vmatprep.subr.bf16.mxu0 0
        %632 = vmatpush1.bf16.msra.mxu0 %v627
        %633 = vmatprep.subr.bf16.mxu0 0
        %634 = vmatpush1.bf16.msra.mxu0 0
        %635 = vmatprep.subr.bf16.mxu0 0
        %636 = vmatpush1.bf16.msra.mxu0 0
        %637 = vmatprep.subr.bf16.mxu0 0
        %638 = vmatpush1.bf16.msra.mxu0 0
        %639 = vmatprep.subr.bf16.mxu0 0
        %640 = vmatpush1.bf16.msra.mxu0 0
        %641 = vmatprep.subr.bf16.mxu0 0
        %642 = vmatpush1.bf16.msra.mxu0 0
        %643 = vmatprep.subr.bf16.mxu0 0
        %644 = vmatpush1.bf16.msra.mxu0 0
        %645 = vmatprep.subr.bf16.mxu0 0
        %646 = vmatpush1.bf16.msra.mxu0 0
        %647 = vmatprep.subr.bf16.mxu0 0
        %648 = vmatpush1.bf16.msra.mxu0 0
        %649 = vmatprep.subr.bf16.mxu0 0
        %650 = vmatpush1.bf16.msra.mxu0 0
        %651 = vmatprep.subr.bf16.mxu0 0
        %652 = vmatpush1.bf16.msra.mxu0 0
        %653 = vmatprep.subr.bf16.mxu0 0
        %654 = vmatpush1.bf16.msra.mxu0 0
        %655 = vmatprep.subr.bf16.mxu0 0
        %656 = vmatpush1.bf16.msra.mxu0 0
        %657 = vmatprep.subr.bf16.mxu0 0
        %658 = vmatpush1.bf16.msra.mxu0 0
        %659 = vmatprep.subr.bf16.mxu0 0
        %660 = vmatpush1.bf16.msra.mxu0 0
        %661 = vmatprep.mubr.bf16.mxu0 0
        %662 = vmatmul.mubr.bf16.gmra.mrb[0].mxu0 %v617
        %v663 = vpop.f32.mrb[0].mxu0
        %v664 = vadd.f32 %v604, %v663
        %v665 = vpop.f32.mrb[0].mxu0
        %v666 = vpop.f32.mrb[0].mxu0
        %v667 = vadd.f32 %v604, %v666
        %v668 = vpop.f32.mrb[0].mxu0
        %669 = vmatprep.mubr.bf16.mxu0 0
        %670 = vmatmul.mubr.bf16.gmra.mrb[0].mxu0 %v620
        %v671 = vpop.f32.mrb[0].mxu0
        %v672 = vadd.f32 %v604, %v671
        %v673 = vpop.f32.mrb[0].mxu0
        %v674 = vpop.f32.mrb[0].mxu0
        %v675 = vadd.f32 %v604, %v674
        %v676 = vpop.f32.mrb[0].mxu0
        %677 = vdwg.mxu0
        %v678 = vpack.c.bf16 %v664, %v664
        %v679 = vpack.c.bf16 %v667, %v667
        %v680 = vpack.c.bf16 %v672, %v672
        %v681 = vpack.c.bf16 %v675, %v675
        %682 = vst [vmem:[#allocation2] sm:$0xf] %v678
        %683 = vst [vmem:[#allocation2 + $0x4] sm:$0xf] %v679
        %684 = vst [vmem:[#allocation2 + $0x8] sm:$0xf] %v680
        %685 = vst [vmem:[#allocation2 + $0xc] sm:$0xf] %v681
        %v686 = vld [vmem:[#allocation4] sm:$0xff]
        %v687 = vld [vmem:[#allocation5] sm:$0xff]
        %v688 = vpack.c.bf16 %v686, %v686
        %v689 = vld [vmem:[#allocation2] sm:$0xf]
        %v690 = vunpack.c.l.bf16 %v689
        %v691 = vld [vmem:[%s5] sm:$0xf]
        %v692 = vld [vmem:[%s5 + $0x4] sm:$0xf]
        %v693 = vld [vmem:[%s5 + $0x8] sm:$0xf]
        %v694 = vld [vmem:[%s5 + $0xc] sm:$0xf]
        %v699 = vunpack.c.l.b16 %v691
        %v700 = vunpack.c.l.b16 %v692
        %v701 = vunpack.c.l.b16 %v693
        %v702 = vunpack.c.l.b16 %v694
        %v703 = vpack.c.b16 %v700, %v699
        %v704 = vpack.c.b16 %v702, %v701
        %vm707 = vcmask 261120
        %v709 = vsel %vm707, %v688, 0
        %711 = vmatprep.subr.bf16.mxu0 0
        %712 = vmatpush1.bf16.msra.mxu0 %v703
        %713 = vmatprep.subr.bf16.mxu0 0
        %714 = vmatpush1.bf16.msra.mxu0 %v704
        %715 = vmatprep.subr.bf16.mxu0 0
        %716 = vmatpush1.bf16.msra.mxu0 0
        %717 = vmatprep.subr.bf16.mxu0 0
        %718 = vmatpush1.bf16.msra.mxu0 0
        %719 = vmatprep.subr.bf16.mxu0 0
        %720 = vmatpush1.bf16.msra.mxu0 0
        %721 = vmatprep.subr.bf16.mxu0 0
        %722 = vmatpush1.bf16.msra.mxu0 0
        %723 = vmatprep.subr.bf16.mxu0 0
        %724 = vmatpush1.bf16.msra.mxu0 0
        %725 = vmatprep.subr.bf16.mxu0 0
        %726 = vmatpush1.bf16.msra.mxu0 0
        %727 = vmatprep.subr.bf16.mxu0 0
        %728 = vmatpush1.bf16.msra.mxu0 0
        %729 = vmatprep.subr.bf16.mxu0 0
        %730 = vmatpush1.bf16.msra.mxu0 0
        %731 = vmatprep.subr.bf16.mxu0 0
        %732 = vmatpush1.bf16.msra.mxu0 0
        %733 = vmatprep.subr.bf16.mxu0 0
        %734 = vmatpush1.bf16.msra.mxu0 0
        %735 = vmatprep.subr.bf16.mxu0 0
        %736 = vmatpush1.bf16.msra.mxu0 0
        %737 = vmatprep.subr.bf16.mxu0 0
        %738 = vmatpush1.bf16.msra.mxu0 0
        %739 = vmatprep.subr.bf16.mxu0 0
        %740 = vmatpush1.bf16.msra.mxu0 0
        %741 = vmatprep.subr.bf16.mxu0 0
        %742 = vmatpush1.bf16.msra.mxu0 0
        %743 = vmatprep.mubr.bf16.mxu0 0
        %744 = vmatmul.mubr.bf16.gmra.mrb[0].mxu0 %v709
        %v745 = vpop.f32.mrb[0].mxu0
        %v746 = vadd.f32 %v690, %v745
        %v747 = vpop.f32.mrb[0].mxu0
        %v748 = vpop.f32.mrb[0].mxu0
        %v749 = vpop.f32.mrb[0].mxu0
        %750 = vdwg.mxu0
        %v751 = vxor.u32 %v746, 2147483648
        %v752 = vmul.f32 %v751, 1.442695
        %v753 = vpow.pop %v752
        %v754 = vadd.f32 %v753, 1.0
        %v755 = vrcp.pop %v754
        %v756 = vmul.f32 1.0, %v755
        %757 = vrot.lane.b32.xlu0 %v703, 64
        %v758 = vpop.permute.xlu0 %757
        %759 = vrot.lane.b32.xlu0 %v704, 64
        %v760 = vpop.permute.xlu0 %759
        %764 = vrot.lane.b32.xlu0 %v690, 64
        %v765 = vpop.permute.xlu0 %764
        %767 = vmatprep.subr.bf16.mxu0 0
        %768 = vmatpush1.bf16.msra.mxu0 %v758
        %769 = vmatprep.subr.bf16.mxu0 0
        %770 = vmatpush1.bf16.msra.mxu0 %v760
        %771 = vmatprep.subr.bf16.mxu0 0
        %772 = vmatpush1.bf16.msra.mxu0 0
        %773 = vmatprep.subr.bf16.mxu0 0
        %774 = vmatpush1.bf16.msra.mxu0 0
        %775 = vmatprep.subr.bf16.mxu0 0
        %776 = vmatpush1.bf16.msra.mxu0 0
        %777 = vmatprep.subr.bf16.mxu0 0
        %778 = vmatpush1.bf16.msra.mxu0 0
        %779 = vmatprep.subr.bf16.mxu0 0
        %780 = vmatpush1.bf16.msra.mxu0 0
        %781 = vmatprep.subr.bf16.mxu0 0
        %782 = vmatpush1.bf16.msra.mxu0 0
        %783 = vmatprep.subr.bf16.mxu0 0
        %784 = vmatpush1.bf16.msra.mxu0 0
        %785 = vmatprep.subr.bf16.mxu0 0
        %786 = vmatpush1.bf16.msra.mxu0 0
        %787 = vmatprep.subr.bf16.mxu0 0
        %788 = vmatpush1.bf16.msra.mxu0 0
        %789 = vmatprep.subr.bf16.mxu0 0
        %790 = vmatpush1.bf16.msra.mxu0 0
        %791 = vmatprep.subr.bf16.mxu0 0
        %792 = vmatpush1.bf16.msra.mxu0 0
        %793 = vmatprep.subr.bf16.mxu0 0
        %794 = vmatpush1.bf16.msra.mxu0 0
        %795 = vmatprep.subr.bf16.mxu0 0
        %796 = vmatpush1.bf16.msra.mxu0 0
        %797 = vmatprep.subr.bf16.mxu0 0
        %798 = vmatpush1.bf16.msra.mxu0 0
        %799 = vmatprep.mubr.bf16.mxu0 0
        %800 = vmatmul.mubr.bf16.gmra.mrb[0].mxu0 %v709
        %v801 = vpop.f32.mrb[0].mxu0
        %v802 = vadd.f32 %v765, %v801
        %v803 = vpop.f32.mrb[0].mxu0
        %v804 = vpop.f32.mrb[0].mxu0
        %v805 = vpop.f32.mrb[0].mxu0
        %806 = vdwg.mxu0
        %v807 = vtanh.pop %v802
        %808 = vrot.lane.b32.xlu0 %v703, 32
        %v809 = vpop.permute.xlu0 %808
        %810 = vrot.lane.b32.xlu0 %v704, 32
        %v811 = vpop.permute.xlu0 %810
        %814 = vrot.lane.b32.xlu0 %v690, 32
        %v815 = vpop.permute.xlu0 %814
        %817 = vmatprep.subr.bf16.mxu0 0
        %818 = vmatpush1.bf16.msra.mxu0 %v809
        %819 = vmatprep.subr.bf16.mxu0 0
        %820 = vmatpush1.bf16.msra.mxu0 %v811
        %821 = vmatprep.subr.bf16.mxu0 0
        %822 = vmatpush1.bf16.msra.mxu0 0
        %823 = vmatprep.subr.bf16.mxu0 0
        %824 = vmatpush1.bf16.msra.mxu0 0
        %825 = vmatprep.subr.bf16.mxu0 0
        %826 = vmatpush1.bf16.msra.mxu0 0
        %827 = vmatprep.subr.bf16.mxu0 0
        %828 = vmatpush1.bf16.msra.mxu0 0
        %829 = vmatprep.subr.bf16.mxu0 0
        %830 = vmatpush1.bf16.msra.mxu0 0
        %831 = vmatprep.subr.bf16.mxu0 0
        %832 = vmatpush1.bf16.msra.mxu0 0
        %833 = vmatprep.subr.bf16.mxu0 0
        %834 = vmatpush1.bf16.msra.mxu0 0
        %835 = vmatprep.subr.bf16.mxu0 0
        %836 = vmatpush1.bf16.msra.mxu0 0
        %837 = vmatprep.subr.bf16.mxu0 0
        %838 = vmatpush1.bf16.msra.mxu0 0
        %839 = vmatprep.subr.bf16.mxu0 0
        %840 = vmatpush1.bf16.msra.mxu0 0
        %841 = vmatprep.subr.bf16.mxu0 0
        %842 = vmatpush1.bf16.msra.mxu0 0
        %843 = vmatprep.subr.bf16.mxu0 0
        %844 = vmatpush1.bf16.msra.mxu0 0
        %845 = vmatprep.subr.bf16.mxu0 0
        %846 = vmatpush1.bf16.msra.mxu0 0
        %847 = vmatprep.subr.bf16.mxu0 0
        %848 = vmatpush1.bf16.msra.mxu0 0
        %849 = vmatprep.mubr.bf16.mxu0 0
        %850 = vmatmul.mubr.bf16.gmra.mrb[0].mxu0 %v709
        %v851 = vpop.f32.mrb[0].mxu0
        %v852 = vadd.f32 %v815, %v851
        %v853 = vpop.f32.mrb[0].mxu0
        %v854 = vpop.f32.mrb[0].mxu0
        %v855 = vpop.f32.mrb[0].mxu0
        %856 = vdwg.mxu0
        %v857 = vxor.u32 %v852, 2147483648
        %v858 = vmul.f32 %v857, 1.442695
        %v859 = vpow.pop %v858
        %v860 = vadd.f32 %v859, 1.0
        %v861 = vrcp.pop %v860
        %v862 = vmul.f32 1.0, %v861
        %864 = vrot.lane.b32.xlu0 %v687, 32
        %v865 = vpop.permute.xlu0 %864
        %v867 = vmul.f32 %v756, %v865
        %v868 = vmul.f32 %v756, %v807
        %870 = vrot.lane.b32.xlu0 %v868, 32
        %v871 = vpop.permute.xlu0 %870
        %v873 = vadd.f32 %v867, %v871
        %v874 = vtanh.pop %v873
        %876 = vrot.lane.b32.xlu0 %v874, 96
        %v877 = vpop.permute.xlu0 %876
        %v879 = vmul.f32 %v862, %v877
        %v880 = vpack.c.bf16 %v879, %v879
        %vm881 = vcmask 257024
        %882 = vst.msk [vmem:[#allocation3] sm:$0xf] %vm881, %v880
        %s883 = scalar_lea.vmem [#allocation2], 4
        %v884 = vld [vmem:[%s883] sm:$0xf]
        %v885 = vunpack.c.l.bf16 %v884
        %v886 = vld [vmem:[%s5] sm:$0xf]
        %v887 = vld [vmem:[%s5 + $0x4] sm:$0xf]
        %v888 = vld [vmem:[%s5 + $0x8] sm:$0xf]
        %v889 = vld [vmem:[%s5 + $0xc] sm:$0xf]
        %v894 = vunpack.c.l.b16 %v886
        %v895 = vunpack.c.l.b16 %v887
        %v896 = vunpack.c.l.b16 %v888
        %v897 = vunpack.c.l.b16 %v889
        %v898 = vpack.c.b16 %v895, %v894
        %v899 = vpack.c.b16 %v897, %v896
        %v903 = vsel %vm707, %v880, 0
        %905 = vmatprep.subr.bf16.mxu0 0
        %906 = vmatpush1.bf16.msra.mxu0 %v898
        %907 = vmatprep.subr.bf16.mxu0 0
        %908 = vmatpush1.bf16.msra.mxu0 %v899
        %909 = vmatprep.subr.bf16.mxu0 0
        %910 = vmatpush1.bf16.msra.mxu0 0
        %911 = vmatprep.subr.bf16.mxu0 0
        %912 = vmatpush1.bf16.msra.mxu0 0
        %913 = vmatprep.subr.bf16.mxu0 0
        %914 = vmatpush1.bf16.msra.mxu0 0
        %915 = vmatprep.subr.bf16.mxu0 0
        %916 = vmatpush1.bf16.msra.mxu0 0
        %917 = vmatprep.subr.bf16.mxu0 0
        %918 = vmatpush1.bf16.msra.mxu0 0
        %919 = vmatprep.subr.bf16.mxu0 0
        %920 = vmatpush1.bf16.msra.mxu0 0
        %921 = vmatprep.subr.bf16.mxu0 0
        %922 = vmatpush1.bf16.msra.mxu0 0
        %923 = vmatprep.subr.bf16.mxu0 0
        %924 = vmatpush1.bf16.msra.mxu0 0
        %925 = vmatprep.subr.bf16.mxu0 0
        %926 = vmatpush1.bf16.msra.mxu0 0
        %927 = vmatprep.subr.bf16.mxu0 0
        %928 = vmatpush1.bf16.msra.mxu0 0
        %929 = vmatprep.subr.bf16.mxu0 0
        %930 = vmatpush1.bf16.msra.mxu0 0
        %931 = vmatprep.subr.bf16.mxu0 0
        %932 = vmatpush1.bf16.msra.mxu0 0
        %933 = vmatprep.subr.bf16.mxu0 0
        %934 = vmatpush1.bf16.msra.mxu0 0
        %935 = vmatprep.subr.bf16.mxu0 0
        %936 = vmatpush1.bf16.msra.mxu0 0
        %937 = vmatprep.mubr.bf16.mxu0 0
        %938 = vmatmul.mubr.bf16.gmra.mrb[0].mxu0 %v903
        %v939 = vpop.f32.mrb[0].mxu0
        %v940 = vadd.f32 %v885, %v939
        %v941 = vpop.f32.mrb[0].mxu0
        %v942 = vpop.f32.mrb[0].mxu0
        %v943 = vpop.f32.mrb[0].mxu0
        %944 = vdwg.mxu0
        %v945 = vxor.u32 %v940, 2147483648
        %v946 = vmul.f32 %v945, 1.442695
        %v947 = vpow.pop %v946
        %v948 = vadd.f32 %v947, 1.0
        %v949 = vrcp.pop %v948
        %v950 = vmul.f32 1.0, %v949
        %951 = vrot.lane.b32.xlu0 %v898, 64
        %v952 = vpop.permute.xlu0 %951
        %953 = vrot.lane.b32.xlu0 %v899, 64
        %v954 = vpop.permute.xlu0 %953
        %958 = vrot.lane.b32.xlu0 %v885, 64
        %v959 = vpop.permute.xlu0 %958
        %961 = vmatprep.subr.bf16.mxu0 0
        %962 = vmatpush1.bf16.msra.mxu0 %v952
        %963 = vmatprep.subr.bf16.mxu0 0
        %964 = vmatpush1.bf16.msra.mxu0 %v954
        %965 = vmatprep.subr.bf16.mxu0 0
        %966 = vmatpush1.bf16.msra.mxu0 0
        %967 = vmatprep.subr.bf16.mxu0 0
        %968 = vmatpush1.bf16.msra.mxu0 0
        %969 = vmatprep.subr.bf16.mxu0 0
        %970 = vmatpush1.bf16.msra.mxu0 0
        %971 = vmatprep.subr.bf16.mxu0 0
        %972 = vmatpush1.bf16.msra.mxu0 0
        %973 = vmatprep.subr.bf16.mxu0 0
        %974 = vmatpush1.bf16.msra.mxu0 0
        %975 = vmatprep.subr.bf16.mxu0 0
        %976 = vmatpush1.bf16.msra.mxu0 0
        %977 = vmatprep.subr.bf16.mxu0 0
        %978 = vmatpush1.bf16.msra.mxu0 0
        %979 = vmatprep.subr.bf16.mxu0 0
        %980 = vmatpush1.bf16.msra.mxu0 0
        %981 = vmatprep.subr.bf16.mxu0 0
        %982 = vmatpush1.bf16.msra.mxu0 0
        %983 = vmatprep.subr.bf16.mxu0 0
        %984 = vmatpush1.bf16.msra.mxu0 0
        %985 = vmatprep.subr.bf16.mxu0 0
        %986 = vmatpush1.bf16.msra.mxu0 0
        %987 = vmatprep.subr.bf16.mxu0 0
        %988 = vmatpush1.bf16.msra.mxu0 0
        %989 = vmatprep.subr.bf16.mxu0 0
        %990 = vmatpush1.bf16.msra.mxu0 0
        %991 = vmatprep.subr.bf16.mxu0 0
        %992 = vmatpush1.bf16.msra.mxu0 0
        %993 = vmatprep.mubr.bf16.mxu0 0
        %994 = vmatmul.mubr.bf16.gmra.mrb[0].mxu0 %v903
        %v995 = vpop.f32.mrb[0].mxu0
        %v996 = vadd.f32 %v959, %v995
        %v997 = vpop.f32.mrb[0].mxu0
        %v998 = vpop.f32.mrb[0].mxu0
        %v999 = vpop.f32.mrb[0].mxu0
        %1000 = vdwg.mxu0
        %v1001 = vtanh.pop %v996
        %1002 = vrot.lane.b32.xlu0 %v898, 32
        %v1003 = vpop.permute.xlu0 %1002
        %1004 = vrot.lane.b32.xlu0 %v899, 32
        %v1005 = vpop.permute.xlu0 %1004
        %1008 = vrot.lane.b32.xlu0 %v885, 32
        %v1009 = vpop.permute.xlu0 %1008
        %1011 = vmatprep.subr.bf16.mxu0 0
        %1012 = vmatpush1.bf16.msra.mxu0 %v1003
        %1013 = vmatprep.subr.bf16.mxu0 0
        %1014 = vmatpush1.bf16.msra.mxu0 %v1005
        %1015 = vmatprep.subr.bf16.mxu0 0
        %1016 = vmatpush1.bf16.msra.mxu0 0
        %1017 = vmatprep.subr.bf16.mxu0 0
        %1018 = vmatpush1.bf16.msra.mxu0 0
        %1019 = vmatprep.subr.bf16.mxu0 0
        %1020 = vmatpush1.bf16.msra.mxu0 0
        %1021 = vmatprep.subr.bf16.mxu0 0
        %1022 = vmatpush1.bf16.msra.mxu0 0
        %1023 = vmatprep.subr.bf16.mxu0 0
        %1024 = vmatpush1.bf16.msra.mxu0 0
        %1025 = vmatprep.subr.bf16.mxu0 0
        %1026 = vmatpush1.bf16.msra.mxu0 0
        %1027 = vmatprep.subr.bf16.mxu0 0
        %1028 = vmatpush1.bf16.msra.mxu0 0
        %1029 = vmatprep.subr.bf16.mxu0 0
        %1030 = vmatpush1.bf16.msra.mxu0 0
        %1031 = vmatprep.subr.bf16.mxu0 0
        %1032 = vmatpush1.bf16.msra.mxu0 0
        %1033 = vmatprep.subr.bf16.mxu0 0
        %1034 = vmatpush1.bf16.msra.mxu0 0
        %1035 = vmatprep.subr.bf16.mxu0 0
        %1036 = vmatpush1.bf16.msra.mxu0 0
        %1037 = vmatprep.subr.bf16.mxu0 0
        %1038 = vmatpush1.bf16.msra.mxu0 0
        %1039 = vmatprep.subr.bf16.mxu0 0
        %1040 = vmatpush1.bf16.msra.mxu0 0
        %1041 = vmatprep.subr.bf16.mxu0 0
        %1042 = vmatpush1.bf16.msra.mxu0 0
        %1043 = vmatprep.mubr.bf16.mxu0 0
        %1044 = vmatmul.mubr.bf16.gmra.mrb[0].mxu0 %v903
        %v1045 = vpop.f32.mrb[0].mxu0
        %v1046 = vadd.f32 %v1009, %v1045
        %v1047 = vpop.f32.mrb[0].mxu0
        %v1048 = vpop.f32.mrb[0].mxu0
        %v1049 = vpop.f32.mrb[0].mxu0
        %1050 = vdwg.mxu0
        %v1051 = vxor.u32 %v1046, 2147483648
        %v1052 = vmul.f32 %v1051, 1.442695
        %v1053 = vpow.pop %v1052
        %v1054 = vadd.f32 %v1053, 1.0
        %v1055 = vrcp.pop %v1054
        %v1056 = vmul.f32 1.0, %v1055
        %v1057 = vmul.f32 %v950, %v873
        %v1058 = vmul.f32 %v950, %v1001
        %1060 = vrot.lane.b32.xlu0 %v1058, 32
        %v1061 = vpop.permute.xlu0 %1060
        %v1063 = vadd.f32 %v1057, %v1061
        %v1064 = vtanh.pop %v1063
        %1066 = vrot.lane.b32.xlu0 %v1064, 96
        %v1067 = vpop.permute.xlu0 %1066
        %v1069 = vmul.f32 %v1056, %v1067
        %v1070 = vpack.c.bf16 %v1069, %v1069
        %s1071 = scalar_lea.vmem [#allocation3], 4
        %1072 = vst.msk [vmem:[%s1071] sm:$0xf] %vm881, %v1070
        %s1073 = scalar_lea.vmem [#allocation2], 8
        %v1074 = vld [vmem:[%s1073] sm:$0xf]
        %v1075 = vunpack.c.l.bf16 %v1074
        %v1076 = vld [vmem:[%s5] sm:$0xf]
        %v1077 = vld [vmem:[%s5 + $0x4] sm:$0xf]
        %v1078 = vld [vmem:[%s5 + $0x8] sm:$0xf]
        %v1079 = vld [vmem:[%s5 + $0xc] sm:$0xf]
        %v1084 = vunpack.c.l.b16 %v1076
        %v1085 = vunpack.c.l.b16 %v1077
        %v1086 = vunpack.c.l.b16 %v1078
        %v1087 = vunpack.c.l.b16 %v1079
        %v1088 = vpack.c.b16 %v1085, %v1084
        %v1089 = vpack.c.b16 %v1087, %v1086
        %v1093 = vsel %vm707, %v1070, 0
        %1095 = vmatprep.subr.bf16.mxu0 0
        %1096 = vmatpush1.bf16.msra.mxu0 %v1088
        %1097 = vmatprep.subr.bf16.mxu0 0
        %1098 = vmatpush1.bf16.msra.mxu0 %v1089
        %1099 = vmatprep.subr.bf16.mxu0 0
        %1100 = vmatpush1.bf16.msra.mxu0 0
        %1101 = vmatprep.subr.bf16.mxu0 0
        %1102 = vmatpush1.bf16.msra.mxu0 0
        %1103 = vmatprep.subr.bf16.mxu0 0
        %1104 = vmatpush1.bf16.msra.mxu0 0
        %1105 = vmatprep.subr.bf16.mxu0 0
        %1106 = vmatpush1.bf16.msra.mxu0 0
        %1107 = vmatprep.subr.bf16.mxu0 0
        %1108 = vmatpush1.bf16.msra.mxu0 0
        %1109 = vmatprep.subr.bf16.mxu0 0
        %1110 = vmatpush1.bf16.msra.mxu0 0
        %1111 = vmatprep.subr.bf16.mxu0 0
        %1112 = vmatpush1.bf16.msra.mxu0 0
        %1113 = vmatprep.subr.bf16.mxu0 0
        %1114 = vmatpush1.bf16.msra.mxu0 0
        %1115 = vmatprep.subr.bf16.mxu0 0
        %1116 = vmatpush1.bf16.msra.mxu0 0
        %1117 = vmatprep.subr.bf16.mxu0 0
        %1118 = vmatpush1.bf16.msra.mxu0 0
        %1119 = vmatprep.subr.bf16.mxu0 0
        %1120 = vmatpush1.bf16.msra.mxu0 0
        %1121 = vmatprep.subr.bf16.mxu0 0
        %1122 = vmatpush1.bf16.msra.mxu0 0
        %1123 = vmatprep.subr.bf16.mxu0 0
        %1124 = vmatpush1.bf16.msra.mxu0 0
        %1125 = vmatprep.subr.bf16.mxu0 0
        %1126 = vmatpush1.bf16.msra.mxu0 0
        %1127 = vmatprep.mubr.bf16.mxu0 0
        %1128 = vmatmul.mubr.bf16.gmra.mrb[0].mxu0 %v1093
        %v1129 = vpop.f32.mrb[0].mxu0
        %v1130 = vadd.f32 %v1075, %v1129
        %v1131 = vpop.f32.mrb[0].mxu0
        %v1132 = vpop.f32.mrb[0].mxu0
        %v1133 = vpop.f32.mrb[0].mxu0
        %1134 = vdwg.mxu0
        %v1135 = vxor.u32 %v1130, 2147483648
        %v1136 = vmul.f32 %v1135, 1.442695
        %v1137 = vpow.pop %v1136
        %v1138 = vadd.f32 %v1137, 1.0
        %v1139 = vrcp.pop %v1138
        %v1140 = vmul.f32 1.0, %v1139
        %1141 = vrot.lane.b32.xlu0 %v1088, 64
        %v1142 = vpop.permute.xlu0 %1141
        %1143 = vrot.lane.b32.xlu0 %v1089, 64
        %v1144 = vpop.permute.xlu0 %1143
        %1148 = vrot.lane.b32.xlu0 %v1075, 64
        %v1149 = vpop.permute.xlu0 %1148
        %1151 = vmatprep.subr.bf16.mxu0 0
        %1152 = vmatpush1.bf16.msra.mxu0 %v1142
        %1153 = vmatprep.subr.bf16.mxu0 0
        %1154 = vmatpush1.bf16.msra.mxu0 %v1144
        %1155 = vmatprep.subr.bf16.mxu0 0
        %1156 = vmatpush1.bf16.msra.mxu0 0
        %1157 = vmatprep.subr.bf16.mxu0 0
        %1158 = vmatpush1.bf16.msra.mxu0 0
        %1159 = vmatprep.subr.bf16.mxu0 0
        %1160 = vmatpush1.bf16.msra.mxu0 0
        %1161 = vmatprep.subr.bf16.mxu0 0
        %1162 = vmatpush1.bf16.msra.mxu0 0
        %1163 = vmatprep.subr.bf16.mxu0 0
        %1164 = vmatpush1.bf16.msra.mxu0 0
        %1165 = vmatprep.subr.bf16.mxu0 0
        %1166 = vmatpush1.bf16.msra.mxu0 0
        %1167 = vmatprep.subr.bf16.mxu0 0
        %1168 = vmatpush1.bf16.msra.mxu0 0
        %1169 = vmatprep.subr.bf16.mxu0 0
        %1170 = vmatpush1.bf16.msra.mxu0 0
        %1171 = vmatprep.subr.bf16.mxu0 0
        %1172 = vmatpush1.bf16.msra.mxu0 0
        %1173 = vmatprep.subr.bf16.mxu0 0
        %1174 = vmatpush1.bf16.msra.mxu0 0
        %1175 = vmatprep.subr.bf16.mxu0 0
        %1176 = vmatpush1.bf16.msra.mxu0 0
        %1177 = vmatprep.subr.bf16.mxu0 0
        %1178 = vmatpush1.bf16.msra.mxu0 0
        %1179 = vmatprep.subr.bf16.mxu0 0
        %1180 = vmatpush1.bf16.msra.mxu0 0
        %1181 = vmatprep.subr.bf16.mxu0 0
        %1182 = vmatpush1.bf16.msra.mxu0 0
        %1183 = vmatprep.mubr.bf16.mxu0 0
        %1184 = vmatmul.mubr.bf16.gmra.mrb[0].mxu0 %v1093
        %v1185 = vpop.f32.mrb[0].mxu0
        %v1186 = vadd.f32 %v1149, %v1185
        %v1187 = vpop.f32.mrb[0].mxu0
        %v1188 = vpop.f32.mrb[0].mxu0
        %v1189 = vpop.f32.mrb[0].mxu0
        %1190 = vdwg.mxu0
        %v1191 = vtanh.pop %v1186
        %1192 = vrot.lane.b32.xlu0 %v1088, 32
        %v1193 = vpop.permute.xlu0 %1192
        %1194 = vrot.lane.b32.xlu0 %v1089, 32
        %v1195 = vpop.permute.xlu0 %1194
        %1198 = vrot.lane.b32.xlu0 %v1075, 32
        %v1199 = vpop.permute.xlu0 %1198
        %1201 = vmatprep.subr.bf16.mxu0 0
        %1202 = vmatpush1.bf16.msra.mxu0 %v1193
        %1203 = vmatprep.subr.bf16.mxu0 0
        %1204 = vmatpush1.bf16.msra.mxu0 %v1195
        %1205 = vmatprep.subr.bf16.mxu0 0
        %1206 = vmatpush1.bf16.msra.mxu0 0
        %1207 = vmatprep.subr.bf16.mxu0 0
        %1208 = vmatpush1.bf16.msra.mxu0 0
        %1209 = vmatprep.subr.bf16.mxu0 0
        %1210 = vmatpush1.bf16.msra.mxu0 0
        %1211 = vmatprep.subr.bf16.mxu0 0
        %1212 = vmatpush1.bf16.msra.mxu0 0
        %1213 = vmatprep.subr.bf16.mxu0 0
        %1214 = vmatpush1.bf16.msra.mxu0 0
        %1215 = vmatprep.subr.bf16.mxu0 0
        %1216 = vmatpush1.bf16.msra.mxu0 0
        %1217 = vmatprep.subr.bf16.mxu0 0
        %1218 = vmatpush1.bf16.msra.mxu0 0
        %1219 = vmatprep.subr.bf16.mxu0 0
        %1220 = vmatpush1.bf16.msra.mxu0 0
        %1221 = vmatprep.subr.bf16.mxu0 0
        %1222 = vmatpush1.bf16.msra.mxu0 0
        %1223 = vmatprep.subr.bf16.mxu0 0
        %1224 = vmatpush1.bf16.msra.mxu0 0
        %1225 = vmatprep.subr.bf16.mxu0 0
        %1226 = vmatpush1.bf16.msra.mxu0 0
        %1227 = vmatprep.subr.bf16.mxu0 0
        %1228 = vmatpush1.bf16.msra.mxu0 0
        %1229 = vmatprep.subr.bf16.mxu0 0
        %1230 = vmatpush1.bf16.msra.mxu0 0
        %1231 = vmatprep.subr.bf16.mxu0 0
        %1232 = vmatpush1.bf16.msra.mxu0 0
        %1233 = vmatprep.mubr.bf16.mxu0 0
        %1234 = vmatmul.mubr.bf16.gmra.mrb[0].mxu0 %v1093
        %v1235 = vpop.f32.mrb[0].mxu0
        %v1236 = vadd.f32 %v1199, %v1235
        %v1237 = vpop.f32.mrb[0].mxu0
        %v1238 = vpop.f32.mrb[0].mxu0
        %v1239 = vpop.f32.mrb[0].mxu0
        %1240 = vdwg.mxu0
        %v1241 = vxor.u32 %v1236, 2147483648
        %v1242 = vmul.f32 %v1241, 1.442695
        %v1243 = vpow.pop %v1242
        %v1244 = vadd.f32 %v1243, 1.0
        %v1245 = vrcp.pop %v1244
        %v1246 = vmul.f32 1.0, %v1245
        %v1247 = vmul.f32 %v1140, %v1063
        %v1248 = vmul.f32 %v1140, %v1191
        %1250 = vrot.lane.b32.xlu0 %v1248, 32
        %v1251 = vpop.permute.xlu0 %1250
        %v1253 = vadd.f32 %v1247, %v1251
        %v1254 = vtanh.pop %v1253
        %1256 = vrot.lane.b32.xlu0 %v1254, 96
        %v1257 = vpop.permute.xlu0 %1256
        %v1259 = vmul.f32 %v1246, %v1257
        %v1260 = vpack.c.bf16 %v1259, %v1259
        %s1261 = scalar_lea.vmem [#allocation3], 8
        %1262 = vst.msk [vmem:[%s1261] sm:$0xf] %vm881, %v1260
        %s1263 = scalar_lea.vmem [#allocation2], 12
        %v1264 = vld [vmem:[%s1263] sm:$0xf]
        %v1265 = vunpack.c.l.bf16 %v1264
        %v1266 = vld [vmem:[%s5] sm:$0xf]
        %v1267 = vld [vmem:[%s5 + $0x4] sm:$0xf]
        %v1268 = vld [vmem:[%s5 + $0x8] sm:$0xf]
        %v1269 = vld [vmem:[%s5 + $0xc] sm:$0xf]
        %v1274 = vunpack.c.l.b16 %v1266
        %v1275 = vunpack.c.l.b16 %v1267
        %v1276 = vunpack.c.l.b16 %v1268
        %v1277 = vunpack.c.l.b16 %v1269
        %v1278 = vpack.c.b16 %v1275, %v1274
        %v1279 = vpack.c.b16 %v1277, %v1276
        %v1283 = vsel %vm707, %v1260, 0
        %1285 = vmatprep.subr.bf16.mxu0 0
        %1286 = vmatpush1.bf16.msra.mxu0 %v1278
        %1287 = vmatprep.subr.bf16.mxu0 0
        %1288 = vmatpush1.bf16.msra.mxu0 %v1279
        %1289 = vmatprep.subr.bf16.mxu0 0
        %1290 = vmatpush1.bf16.msra.mxu0 0
        %1291 = vmatprep.subr.bf16.mxu0 0
        %1292 = vmatpush1.bf16.msra.mxu0 0
        %1293 = vmatprep.subr.bf16.mxu0 0
        %1294 = vmatpush1.bf16.msra.mxu0 0
        %1295 = vmatprep.subr.bf16.mxu0 0
        %1296 = vmatpush1.bf16.msra.mxu0 0
        %1297 = vmatprep.subr.bf16.mxu0 0
        %1298 = vmatpush1.bf16.msra.mxu0 0
        %1299 = vmatprep.subr.bf16.mxu0 0
        %1300 = vmatpush1.bf16.msra.mxu0 0
        %1301 = vmatprep.subr.bf16.mxu0 0
        %1302 = vmatpush1.bf16.msra.mxu0 0
        %1303 = vmatprep.subr.bf16.mxu0 0
        %1304 = vmatpush1.bf16.msra.mxu0 0
        %1305 = vmatprep.subr.bf16.mxu0 0
        %1306 = vmatpush1.bf16.msra.mxu0 0
        %1307 = vmatprep.subr.bf16.mxu0 0
        %1308 = vmatpush1.bf16.msra.mxu0 0
        %1309 = vmatprep.subr.bf16.mxu0 0
        %1310 = vmatpush1.bf16.msra.mxu0 0
        %1311 = vmatprep.subr.bf16.mxu0 0
        %1312 = vmatpush1.bf16.msra.mxu0 0
        %1313 = vmatprep.subr.bf16.mxu0 0
        %1314 = vmatpush1.bf16.msra.mxu0 0
        %1315 = vmatprep.subr.bf16.mxu0 0
        %1316 = vmatpush1.bf16.msra.mxu0 0
        %1317 = vmatprep.mubr.bf16.mxu0 0
        %1318 = vmatmul.mubr.bf16.gmra.mrb[0].mxu0 %v1283
        %v1319 = vpop.f32.mrb[0].mxu0
        %v1320 = vadd.f32 %v1265, %v1319
        %v1321 = vpop.f32.mrb[0].mxu0
        %v1322 = vpop.f32.mrb[0].mxu0
        %v1323 = vpop.f32.mrb[0].mxu0
        %1324 = vdwg.mxu0
        %v1325 = vxor.u32 %v1320, 2147483648
        %v1326 = vmul.f32 %v1325, 1.442695
        %v1327 = vpow.pop %v1326
        %v1328 = vadd.f32 %v1327, 1.0
        %v1329 = vrcp.pop %v1328
        %v1330 = vmul.f32 1.0, %v1329
        %1331 = vrot.lane.b32.xlu0 %v1278, 64
        %v1332 = vpop.permute.xlu0 %1331
        %1333 = vrot.lane.b32.xlu0 %v1279, 64
        %v1334 = vpop.permute.xlu0 %1333
        %1338 = vrot.lane.b32.xlu0 %v1265, 64
        %v1339 = vpop.permute.xlu0 %1338
        %1341 = vmatprep.subr.bf16.mxu0 0
        %1342 = vmatpush1.bf16.msra.mxu0 %v1332
        %1343 = vmatprep.subr.bf16.mxu0 0
        %1344 = vmatpush1.bf16.msra.mxu0 %v1334
        %1345 = vmatprep.subr.bf16.mxu0 0
        %1346 = vmatpush1.bf16.msra.mxu0 0
        %1347 = vmatprep.subr.bf16.mxu0 0
        %1348 = vmatpush1.bf16.msra.mxu0 0
        %1349 = vmatprep.subr.bf16.mxu0 0
        %1350 = vmatpush1.bf16.msra.mxu0 0
        %1351 = vmatprep.subr.bf16.mxu0 0
        %1352 = vmatpush1.bf16.msra.mxu0 0
        %1353 = vmatprep.subr.bf16.mxu0 0
        %1354 = vmatpush1.bf16.msra.mxu0 0
        %1355 = vmatprep.subr.bf16.mxu0 0
        %1356 = vmatpush1.bf16.msra.mxu0 0
        %1357 = vmatprep.subr.bf16.mxu0 0
        %1358 = vmatpush1.bf16.msra.mxu0 0
        %1359 = vmatprep.subr.bf16.mxu0 0
        %1360 = vmatpush1.bf16.msra.mxu0 0
        %1361 = vmatprep.subr.bf16.mxu0 0
        %1362 = vmatpush1.bf16.msra.mxu0 0
        %1363 = vmatprep.subr.bf16.mxu0 0
        %1364 = vmatpush1.bf16.msra.mxu0 0
        %1365 = vmatprep.subr.bf16.mxu0 0
        %1366 = vmatpush1.bf16.msra.mxu0 0
        %1367 = vmatprep.subr.bf16.mxu0 0
        %1368 = vmatpush1.bf16.msra.mxu0 0
        %1369 = vmatprep.subr.bf16.mxu0 0
        %1370 = vmatpush1.bf16.msra.mxu0 0
        %1371 = vmatprep.subr.bf16.mxu0 0
        %1372 = vmatpush1.bf16.msra.mxu0 0
        %1373 = vmatprep.mubr.bf16.mxu0 0
        %1374 = vmatmul.mubr.bf16.gmra.mrb[0].mxu0 %v1283
        %v1375 = vpop.f32.mrb[0].mxu0
        %v1376 = vadd.f32 %v1339, %v1375
        %v1377 = vpop.f32.mrb[0].mxu0
        %v1378 = vpop.f32.mrb[0].mxu0
        %v1379 = vpop.f32.mrb[0].mxu0
        %1380 = vdwg.mxu0
        %v1381 = vtanh.pop %v1376
        %1382 = vrot.lane.b32.xlu0 %v1278, 32
        %v1383 = vpop.permute.xlu0 %1382
        %1384 = vrot.lane.b32.xlu0 %v1279, 32
        %v1385 = vpop.permute.xlu0 %1384
        %1388 = vrot.lane.b32.xlu0 %v1265, 32
        %v1389 = vpop.permute.xlu0 %1388
        %1391 = vmatprep.subr.bf16.mxu0 0
        %1392 = vmatpush1.bf16.msra.mxu0 %v1383
        %1393 = vmatprep.subr.bf16.mxu0 0
        %1394 = vmatpush1.bf16.msra.mxu0 %v1385
        %1395 = vmatprep.subr.bf16.mxu0 0
        %1396 = vmatpush1.bf16.msra.mxu0 0
        %1397 = vmatprep.subr.bf16.mxu0 0
        %1398 = vmatpush1.bf16.msra.mxu0 0
        %1399 = vmatprep.subr.bf16.mxu0 0
        %1400 = vmatpush1.bf16.msra.mxu0 0
        %1401 = vmatprep.subr.bf16.mxu0 0
        %1402 = vmatpush1.bf16.msra.mxu0 0
        %1403 = vmatprep.subr.bf16.mxu0 0
        %1404 = vmatpush1.bf16.msra.mxu0 0
        %1405 = vmatprep.subr.bf16.mxu0 0
        %1406 = vmatpush1.bf16.msra.mxu0 0
        %1407 = vmatprep.subr.bf16.mxu0 0
        %1408 = vmatpush1.bf16.msra.mxu0 0
        %1409 = vmatprep.subr.bf16.mxu0 0
        %1410 = vmatpush1.bf16.msra.mxu0 0
        %1411 = vmatprep.subr.bf16.mxu0 0
        %1412 = vmatpush1.bf16.msra.mxu0 0
        %1413 = vmatprep.subr.bf16.mxu0 0
        %1414 = vmatpush1.bf16.msra.mxu0 0
        %1415 = vmatprep.subr.bf16.mxu0 0
        %1416 = vmatpush1.bf16.msra.mxu0 0
        %1417 = vmatprep.subr.bf16.mxu0 0
        %1418 = vmatpush1.bf16.msra.mxu0 0
        %1419 = vmatprep.subr.bf16.mxu0 0
        %1420 = vmatpush1.bf16.msra.mxu0 0
        %1421 = vmatprep.subr.bf16.mxu0 0
        %1422 = vmatpush1.bf16.msra.mxu0 0
        %1423 = vmatprep.mubr.bf16.mxu0 0
        %1424 = vmatmul.mubr.bf16.gmra.mrb[0].mxu0 %v1283
        %v1425 = vpop.f32.mrb[0].mxu0
        %v1426 = vadd.f32 %v1389, %v1425
        %v1427 = vpop.f32.mrb[0].mxu0
        %v1428 = vpop.f32.mrb[0].mxu0
        %v1429 = vpop.f32.mrb[0].mxu0
        %1430 = vdwg.mxu0
        %v1431 = vxor.u32 %v1426, 2147483648
        %v1432 = vmul.f32 %v1431, 1.442695
        %v1433 = vpow.pop %v1432
        %v1434 = vadd.f32 %v1433, 1.0
        %v1435 = vrcp.pop %v1434
        %v1436 = vmul.f32 1.0, %v1435
        %v1437 = vmul.f32 %v1330, %v1253
        %v1438 = vmul.f32 %v1330, %v1381
        %1440 = vrot.lane.b32.xlu0 %v1438, 32
        %v1441 = vpop.permute.xlu0 %1440
        %v1443 = vadd.f32 %v1437, %v1441
        %v1444 = vtanh.pop %v1443
        %1446 = vrot.lane.b32.xlu0 %v1444, 96
        %v1447 = vpop.permute.xlu0 %1446
        %v1449 = vmul.f32 %v1436, %v1447
        %v1450 = vpack.c.bf16 %v1449, %v1449
        %s1451 = scalar_lea.vmem [#allocation3], 12
        %1452 = vst.msk [vmem:[%s1451] sm:$0xf] %vm881, %v1450
        %1453 = vst.msk [vmem:[#allocation4] sm:$0xff] %vm707, %v1449
        %1455 = vrot.lane.b32.xlu0 %v1443, 96
        %v1456 = vpop.permute.xlu0 %1455
        %1458 = vst.msk [vmem:[#allocation5] sm:$0xff] %vm707, %v1456
        %1459 = vst.msk [vmem:[#allocation16] sm:$0xff] %vm707, %v1449
        %1460 = vst.msk [vmem:[#allocation18] sm:$0xff] %vm707, %v1456
        %v1461 = vld [vmem:[#allocation3] sm:$0xf]
        %v1462 = vld [vmem:[#allocation3 + $0x4] sm:$0xf]
        %v1463 = vld [vmem:[#allocation3 + $0x8] sm:$0xf]
        %v1464 = vld [vmem:[#allocation3 + $0xc] sm:$0xf]
        %v1465 = vld [vmem:[#allocation14] sm:$0xf]
        %v1466 = vld [vmem:[#allocation14 + $0x4] sm:$0xf]
        %v1467 = vld [vmem:[#allocation14 + $0x8] sm:$0xf]
        %v1468 = vld [vmem:[#allocation14 + $0xc] sm:$0xf]
        %v1469 = vld [vmem:[%s8] sm:$0x1]
        %v1471 = vlaneseq
        %v1472 = vshrl.u32 %v1471, 7
        %v1473 = vsub.s32 0, %v1472
        %v1474 = vrot.slane %v1469, %v1473
        %v1480 = vunpack.c.l.b16 %v1461
        %v1481 = vunpack.c.l.b16 %v1462
        %v1482 = vunpack.c.l.b16 %v1463
        %v1483 = vunpack.c.l.b16 %v1464
        %v1484 = vpack.c.b16 %v1481, %v1480
        %v1485 = vpack.c.b16 %v1483, %v1482
        %v1490 = vunpack.c.l.b16 %v1465
        %v1491 = vunpack.c.l.b16 %v1466
        %v1492 = vunpack.c.l.b16 %v1467
        %v1493 = vunpack.c.l.b16 %v1468
        %v1494 = vpack.c.b16 %v1491, %v1490
        %v1495 = vpack.c.b16 %v1493, %v1492
        %v1499 = vsel %vm707, %v1484, 0
        %v1502 = vsel %vm707, %v1485, 0
        %1504 = vmatprep.subr.bf16.mxu0 0
        %1505 = vmatpush1.bf16.msra.mxu0 %v1494
        %1506 = vmatprep.subr.bf16.mxu0 0
        %1507 = vmatpush1.bf16.msra.mxu0 %v1495
        %1508 = vmatprep.subr.bf16.mxu0 0
        %1509 = vmatpush1.bf16.msra.mxu0 0
        %1510 = vmatprep.subr.bf16.mxu0 0
        %1511 = vmatpush1.bf16.msra.mxu0 0
        %1512 = vmatprep.subr.bf16.mxu0 0
        %1513 = vmatpush1.bf16.msra.mxu0 0
        %1514 = vmatprep.subr.bf16.mxu0 0
        %1515 = vmatpush1.bf16.msra.mxu0 0
        %1516 = vmatprep.subr.bf16.mxu0 0
        %1517 = vmatpush1.bf16.msra.mxu0 0
        %1518 = vmatprep.subr.bf16.mxu0 0
        %1519 = vmatpush1.bf16.msra.mxu0 0
        %1520 = vmatprep.subr.bf16.mxu0 0
        %1521 = vmatpush1.bf16.msra.mxu0 0
        %1522 = vmatprep.subr.bf16.mxu0 0
        %1523 = vmatpush1.bf16.msra.mxu0 0
        %1524 = vmatprep.subr.bf16.mxu0 0
        %1525 = vmatpush1.bf16.msra.mxu0 0
        %1526 = vmatprep.subr.bf16.mxu0 0
        %1527 = vmatpush1.bf16.msra.mxu0 0
        %1528 = vmatprep.subr.bf16.mxu0 0
        %1529 = vmatpush1.bf16.msra.mxu0 0
        %1530 = vmatprep.subr.bf16.mxu0 0
        %1531 = vmatpush1.bf16.msra.mxu0 0
        %1532 = vmatprep.subr.bf16.mxu0 0
        %1533 = vmatpush1.bf16.msra.mxu0 0
        %1534 = vmatprep.subr.bf16.mxu0 0
        %1535 = vmatpush1.bf16.msra.mxu0 0
        %1536 = vmatprep.mubr.bf16.mxu0 0
        %1537 = vmatmul.mubr.bf16.gmra.mrb[0].mxu0 %v1499
        %v1538 = vpop.f32.mrb[0].mxu0
        %v1539 = vadd.f32 %v1474, %v1538
        %v1540 = vpop.f32.mrb[0].mxu0
        %v1541 = vpop.f32.mrb[0].mxu0
        %v1542 = vadd.f32 %v1474, %v1541
        %v1543 = vpop.f32.mrb[0].mxu0
        %1544 = vmatprep.mubr.bf16.mxu0 0
        %1545 = vmatmul.mubr.bf16.gmra.mrb[0].mxu0 %v1502
        %v1546 = vpop.f32.mrb[0].mxu0
        %v1547 = vadd.f32 %v1474, %v1546
        %v1548 = vpop.f32.mrb[0].mxu0
        %v1549 = vpop.f32.mrb[0].mxu0
        %v1550 = vadd.f32 %v1474, %v1549
        %v1551 = vpop.f32.mrb[0].mxu0
        %1552 = vdwg.mxu0
        %v1553 = vlaneseq
        %v1554 = vand.u32 %v1553, 127
        %vm1555 = vcmp.lt.s32.totalorder %v1554, 4
        %vm1556 = vcmp.ge.s32.totalorder %v1554, 12
        %vm1557 = vcmp.lt.s32.totalorder %v1554, 20
        %vm1558 = vmand %vm1556, %vm1557
        %vm1559 = vcmp.ge.s32.totalorder %v1554, 20
        %vm1560 = vcmp.lt.s32.totalorder %v1554, 24
        %vm1561 = vmand %vm1559, %vm1560
        %vm1562 = vcmp.ge.s32.totalorder %v1554, 24
        %vm1563 = vcmp.lt.s32.totalorder %v1554, 27
        %vm1564 = vmand %vm1562, %vm1563
        %vm1565 = vcmp.ge.s32.totalorder %v1554, 27
        %v1566 = vsel %vm1555, %v1539, -1e+30
        %v1567 = vsel %vm1555, %v1542, -1e+30
        %v1568 = vsel %vm1555, %v1547, -1e+30
        %v1569 = vsel %vm1555, %v1550, -1e+30
        %1570 = vmax.xlane.f32.xlu0 %v1566
        %v1571 = vpop.xlane.xlu0 %1570
        %1572 = vmax.xlane.f32.xlu0 %v1567
        %v1573 = vpop.xlane.xlu0 %1572
        %1574 = vmax.xlane.f32.xlu0 %v1568
        %v1575 = vpop.xlane.xlu0 %1574
        %1576 = vmax.xlane.f32.xlu0 %v1569
        %v1577 = vpop.xlane.xlu0 %1576
        %v1578 = vsub.f32 %v1539, %v1571
        %v1579 = vsub.f32 %v1542, %v1573
        %v1580 = vsub.f32 %v1547, %v1575
        %v1581 = vsub.f32 %v1550, %v1577
        %v1582 = vmul.f32 %v1578, 1.442695
        %v1583 = vpow.pop %v1582
        %v1584 = vmul.f32 %v1579, 1.442695
        %v1585 = vpow.pop %v1584
        %v1586 = vmul.f32 %v1580, 1.442695
        %v1587 = vpow.pop %v1586
        %v1588 = vmul.f32 %v1581, 1.442695
        %v1589 = vpow.pop %v1588
        %v1590 = vsel %vm1555, %v1583, 0.0
        %v1591 = vsel %vm1555, %v1585, 0.0
        %v1592 = vsel %vm1555, %v1587, 0.0
        %v1593 = vsel %vm1555, %v1589, 0.0
        %1594 = vadd.xlane.f32.xlu0 %v1590
        %v1595 = vpop.xlane.xlu0 %1594
        %1596 = vadd.xlane.f32.xlu0 %v1591
        %v1597 = vpop.xlane.xlu0 %1596
        %1598 = vadd.xlane.f32.xlu0 %v1592
        %v1599 = vpop.xlane.xlu0 %1598
        %1600 = vadd.xlane.f32.xlu0 %v1593
        %v1601 = vpop.xlane.xlu0 %1600
        %v1602 = vrcp.pop %v1595
        %v1603 = vmul.f32 %v1590, %v1602
        %v1604 = vrcp.pop %v1597
        %v1605 = vmul.f32 %v1591, %v1604
        %v1606 = vrcp.pop %v1599
        %v1607 = vmul.f32 %v1592, %v1606
        %v1608 = vrcp.pop %v1601
        %v1609 = vmul.f32 %v1593, %v1608
        %v1610 = vsel %vm1555, %v1603, %v1539
        %v1611 = vsel %vm1555, %v1605, %v1542
        %v1612 = vsel %vm1555, %v1607, %v1547
        %v1613 = vsel %vm1555, %v1609, %v1550
        %v1614 = vmul.f32 %v1539, 1.442695
        %v1615 = vpow.pop %v1614
        %v1616 = vmul.f32 %v1542, 1.442695
        %v1617 = vpow.pop %v1616
        %v1618 = vmul.f32 %v1547, 1.442695
        %v1619 = vpow.pop %v1618
        %v1620 = vmul.f32 %v1550, 1.442695
        %v1621 = vpow.pop %v1620
        %v1622 = vsel %vm1558, %v1615, %v1610
        %v1623 = vsel %vm1558, %v1617, %v1611
        %v1624 = vsel %vm1558, %v1619, %v1612
        %v1625 = vsel %vm1558, %v1621, %v1613
        %v1626 = vtanh.pop %v1539
        %v1627 = vtanh.pop %v1542
        %v1628 = vtanh.pop %v1547
        %v1629 = vtanh.pop %v1550
        %v1630 = vsel %vm1561, %v1626, %v1622
        %v1631 = vsel %vm1561, %v1627, %v1623
        %v1632 = vsel %vm1561, %v1628, %v1624
        %v1633 = vsel %vm1561, %v1629, %v1625
        %v1634 = vsel %vm1564, %v1539, -1e+30
        %v1635 = vsel %vm1564, %v1542, -1e+30
        %v1636 = vsel %vm1564, %v1547, -1e+30
        %v1637 = vsel %vm1564, %v1550, -1e+30
        %1638 = vmax.xlane.f32.xlu0 %v1634
        %v1639 = vpop.xlane.xlu0 %1638
        %1640 = vmax.xlane.f32.xlu0 %v1635
        %v1641 = vpop.xlane.xlu0 %1640
        %1642 = vmax.xlane.f32.xlu0 %v1636
        %v1643 = vpop.xlane.xlu0 %1642
        %1644 = vmax.xlane.f32.xlu0 %v1637
        %v1645 = vpop.xlane.xlu0 %1644
        %v1646 = vsub.f32 %v1539, %v1639
        %v1647 = vsub.f32 %v1542, %v1641
        %v1648 = vsub.f32 %v1547, %v1643
        %v1649 = vsub.f32 %v1550, %v1645
        %v1650 = vmul.f32 %v1646, 1.442695
        %v1651 = vpow.pop %v1650
        %v1652 = vmul.f32 %v1647, 1.442695
        %v1653 = vpow.pop %v1652
        %v1654 = vmul.f32 %v1648, 1.442695
        %v1655 = vpow.pop %v1654
        %v1656 = vmul.f32 %v1649, 1.442695
        %v1657 = vpow.pop %v1656
        %v1658 = vsel %vm1564, %v1651, 0.0
        %v1659 = vsel %vm1564, %v1653, 0.0
        %v1660 = vsel %vm1564, %v1655, 0.0
        %v1661 = vsel %vm1564, %v1657, 0.0
        %1662 = vadd.xlane.f32.xlu0 %v1658
        %v1663 = vpop.xlane.xlu0 %1662
        %1664 = vadd.xlane.f32.xlu0 %v1659
        %v1665 = vpop.xlane.xlu0 %1664
        %1666 = vadd.xlane.f32.xlu0 %v1660
        %v1667 = vpop.xlane.xlu0 %1666
        %1668 = vadd.xlane.f32.xlu0 %v1661
        %v1669 = vpop.xlane.xlu0 %1668
        %v1670 = vrcp.pop %v1663
        %v1671 = vmul.f32 %v1658, %v1670
        %v1672 = vrcp.pop %v1665
        %v1673 = vmul.f32 %v1659, %v1672
        %v1674 = vrcp.pop %v1667
        %v1675 = vmul.f32 %v1660, %v1674
        %v1676 = vrcp.pop %v1669
        %v1677 = vmul.f32 %v1661, %v1676
        %v1678 = vsel %vm1564, %v1671, %v1630
        %v1679 = vsel %vm1564, %v1673, %v1631
        %v1680 = vsel %vm1564, %v1675, %v1632
        %v1681 = vsel %vm1564, %v1677, %v1633
        %v1682 = vsel %vm1565, 0.0, %v1678
        %v1683 = vsel %vm1565, 0.0, %v1679
        %v1684 = vsel %vm1565, 0.0, %v1680
        %v1685 = vsel %vm1565, 0.0, %v1681
        %1686 = vst [vmem:[%s486] sm:$0xff] %v1682
        %1687 = vst [vmem:[%s486 + $0x8] sm:$0xff] %v1683
        %1688 = vst [vmem:[%s486 + $0x10] sm:$0xff] %v1684
        %1689 = vst [vmem:[%s486 + $0x18] sm:$0xff] %v1685
        %s1690 = sand.u32 %s255, 1
        %s1691 = scalar_lea.sflag [#allocation8], %s1690
        %s1692 = sand.u32 %s255, 1
        %s1693 = smul.addr %s1692, 32
        %s1694 = scalar_lea.vmem [#allocation15], %s1693
        // Predicated region
        $region81: #{tpu_custom_call.1} parent=55 // pred_check
          %p1695 = pneg %p265
        $region82: #{tpu_custom_call.1} parent=55 // pred_check_branch
          %1697 = sbr.rel (%p1695) target = $region84
        $region83: #{tpu_custom_call.1} parent=55 // pred_region
          %s1698 = smul.u32 4, %s37
          %s1700 = ssub.s32 512, 512
          %1701 = vsyncadd %s1691, %s1700
          %s1702 = sadd.s32 %s36, %s1698
          %s1703 = smul.addr %s1702, 128
          %s1704 = scalar_lea.hbm %s9, %s1703
          %s1705 = sshll.u32 %s1694, 4
          %s1706 = int_to_ptr.vmem [resolvable:$true] %s1705
          %1711 = dma.vmem_to_hbm [thread:$0]  %s1706, 512, %s1704, %s1691, 128, 128, 8
        $region84: #{tpu_custom_call.1} parent=55 // pred_fallthru
          _
        // Predicated region
        $region85: #{tpu_custom_call.1} parent=55 // pred_check
          %p1712 = pneg %p291
        $region86: #{tpu_custom_call.1} parent=55 // pred_check_branch
          %1714 = sbr.rel (%p1712) target = $region88
        $region87: #{tpu_custom_call.1} parent=55 // pred_region
          %s1716 = ssub.s32 128, 128
          %1717 = vsyncadd [#allocation17], %s1716
          %s1718 = smul.addr %s36, 128
          %s1719 = scalar_lea.hbm %s10, %s1718
          %s1721 = sshll.u32 [#allocation16], 4
          %s1722 = int_to_ptr.vmem [resolvable:$true] %s1721
          %1724 = dma.vmem_to_hbm [thread:$0]  %s1722, 128, %s1719, [#allocation17]
        $region88: #{tpu_custom_call.1} parent=55 // pred_fallthru
          _
        // Predicated region
        $region89: #{tpu_custom_call.1} parent=55 // pred_check
          %p1725 = pneg %p317
        $region90: #{tpu_custom_call.1} parent=55 // pred_check_branch
          %1727 = sbr.rel (%p1725) target = $region92
        $region91: #{tpu_custom_call.1} parent=55 // pred_region
          %s1729 = ssub.s32 128, 128
          %1730 = vsyncadd [#allocation17], %s1729
          %s1731 = smul.addr %s36, 128
          %s1732 = scalar_lea.hbm %s11, %s1731
          %s1734 = sshll.u32 [#allocation18], 4
          %s1735 = int_to_ptr.vmem [resolvable:$true] %s1734
          %1737 = dma.vmem_to_hbm [thread:$0]  %s1735, 128, %s1732, [#allocation17]
        $region92: #{tpu_custom_call.1} parent=55 // pred_fallthru
          _
        // Predicated region
        $region93: #{tpu_custom_call.1} parent=55 // pred_check
          %p1738 = pneg %p291
        $region94: #{tpu_custom_call.1} parent=55 // pred_check_branch
          %1740 = sbr.rel (%p1738) target = $region96
        $region95: #{tpu_custom_call.1} parent=55 // pred_region
          %1741 = dma.done [#allocation17], 128
        $region96: #{tpu_custom_call.1} parent=55 // pred_fallthru
          _
        // Predicated region
        $region97: #{tpu_custom_call.1} parent=55 // pred_check
          %p1742 = pneg %p317
        $region98: #{tpu_custom_call.1} parent=55 // pred_check_branch
          %1744 = sbr.rel (%p1742) target = $region100
        $region99: #{tpu_custom_call.1} parent=55 // pred_region
          %1745 = dma.done [#allocation17], 128
        $region100: #{tpu_custom_call.1} parent=55 // pred_fallthru
          _
      $region56: #{tpu_custom_call.1} parent=5 // pred_fallthru
        _
      %p1746 = scmp.le.s32.totalorder 2, %s27
      // Predicated region
      $region101: #{tpu_custom_call.1} parent=5 // pred_check
        %p1747 = pneg %p1746
      $region102: #{tpu_custom_call.1} parent=5 // pred_check_branch
        %1749 = sbr.rel (%p1747) target = $region104
      $region103: #{tpu_custom_call.1} parent=5 // pred_region
        %s1750 = ssub.s32 %s27, 2
        // Predicated region
        $region105: #{tpu_custom_call.1} parent=103 // pred_check
          %p1751 = pneg %p271
        $region106: #{tpu_custom_call.1} parent=103 // pred_check_branch
          %1753 = sbr.rel (%p1751) target = $region108
        $region107: #{tpu_custom_call.1} parent=103 // pred_region
          %s1754 = sand.u32 %s256, 1
          %s1755 = scalar_lea.sflag [#allocation8], %s1754
          %s1756 = sand.u32 %s256, 1
          %s1757 = smul.addr %s1756, 32
          %s1758 = scalar_lea.vmem [#allocation15], %s1757
          %1759 = dma.done %s1755, 512
        $region108: #{tpu_custom_call.1} parent=103 // pred_fallthru
          _
      $region104: #{tpu_custom_call.1} parent=5 // pred_fallthru
        _
    $region6: #{tpu_custom_call.1} parent=1 // loop_footer
      %s31 = sadd.s32 1, %s27
    $region7: #{tpu_custom_call.1} parent=1 // loop_footer_branch
      %26 = sbr.rel target = $region3
    $region8: #{tpu_custom_call.1} parent=1 // loop_exit
      _
    %1760 = vsyncpa [#allocation7], 1
    %s1761 = scalar_lea.sflag [#allocation7], 1
    %1762 = vsyncpa %s1761, 1
    %1763 = vsyncpa [#allocation10], 1
    %1764 = vsyncpa [#allocation13], 1
    %1765 = vsyncpa [#allocation8], 1
    %s1766 = scalar_lea.sflag [#allocation8], 1
    %1767 = vsyncpa %s1766, 1
    %1768 = vsyncpa [#allocation17], 1

</llo_original>
